<compile_context>
chip_gen: v7x
topology: tpu7x:2x2x1
jax: 0.10.0
libtpu: 0.0.40
codegen_flags: <defaults>
</compile_context>

<pallas_src>
import math

import numpy as np
import jax
import jax.numpy as jnp
from jax.experimental import pallas as pl
from jax.experimental.pallas import tpu as pltpu


# --------------------------------------------------------------------------
# Kernel: one grid step == one batch tile of TB timesteps.
# --------------------------------------------------------------------------
def _time_embed_kernel(t_ref, freqs_ref, wc_ref, ws_ref, bin_ref,
                       wo_ref, bo_ref, out_ref):
    t = t_ref[...]                                   # (TB, 1)
    f = freqs_ref[...]                               # (1, half)

    args = t * f                                     # (TB, half) broadcast outer
    cos = jnp.cos(args)
    sin = jnp.sin(args)

    # in_layer:  cat([cos, sin]) @ W_in.T + b_in  ==  cos@Wc + sin@Ws + b_in
    h = (jnp.dot(cos, wc_ref[...], preferred_element_type=jnp.float32)
         + jnp.dot(sin, ws_ref[...], preferred_element_type=jnp.float32)
         + bin_ref[...])                             # (TB, time_dim)

    # SiLU (exact): h * sigmoid(h)
    h = h * (1.0 / (1.0 + jnp.exp(-h)))

    # out_layer
    out_ref[...] = (jnp.dot(h, wo_ref[...], preferred_element_type=jnp.float32)
                    + bo_ref[...]).astype(out_ref.dtype)


# --------------------------------------------------------------------------
# Wrapper: parameter repacking, batch padding/tiling, pallas_call.
# --------------------------------------------------------------------------
def time_embeddings(time, freqs, w_in, b_in, w_out, b_out):
    """time: (B,) f32; w_in: (time_dim, model_dim); w_out: (time_dim, time_dim)."""
    B = time.shape[0]
    time_dim, model_dim = w_in.shape
    half = model_dim // 2
    assert freqs.shape == (half,)

    # batch tile: multiple of 8 sublanes, capped so weights + activations stay
    # comfortably inside the default scoped-VMEM budget on all generations.
    if B <= 256:
        TB = ((B + 7) // 8) * 8
    else:
        TB = 256
    padded_B = ((B + TB - 1) // TB) * TB

    t2d = jnp.zeros((padded_B, 1), jnp.float32).at[:B, 0].set(
        time.astype(jnp.float32))

    # torch Linear: y = x @ W.T + b  ->  pre-transpose, split cos/sin halves.
    w_in_t = w_in.T.astype(jnp.float32)              # (model_dim, time_dim)
    w_cos = w_in_t[:half]                            # (half, time_dim)
    w_sin = w_in_t[half:]                            # (half, time_dim)
    w_out_t = w_out.T.astype(jnp.float32)            # (time_dim, time_dim)

    freqs_2d = freqs.reshape(1, half).astype(jnp.float32)
    b_in_2d = b_in.reshape(1, time_dim).astype(jnp.float32)
    b_out_2d = b_out.reshape(1, time_dim).astype(jnp.float32)

    out = pl.pallas_call(
        _time_embed_kernel,
        out_shape=jax.ShapeDtypeStruct((padded_B, time_dim), jnp.float32),
        grid_spec=pltpu.PrefetchScalarGridSpec(
            num_scalar_prefetch=0,
            grid=(padded_B // TB,),
            in_specs=[
                pl.BlockSpec((TB, 1), lambda i: (i, 0)),               # time
                pl.BlockSpec((1, half), lambda i: (0, 0)),             # freqs
                pl.BlockSpec((half, time_dim), lambda i: (0, 0)),      # W_in cos half
                pl.BlockSpec((half, time_dim), lambda i: (0, 0)),      # W_in sin half
                pl.BlockSpec((1, time_dim), lambda i: (0, 0)),         # b_in
                pl.BlockSpec((time_dim, time_dim), lambda i: (0, 0)),  # W_out
                pl.BlockSpec((1, time_dim), lambda i: (0, 0)),         # b_out
            ],
            out_specs=pl.BlockSpec((TB, time_dim), lambda i: (i, 0)),
        ),
        compiler_params=pltpu.CompilerParams(
            dimension_semantics=("parallel",)),
    )(t2d, freqs_2d, w_cos, w_sin, b_in_2d, w_out_t, b_out_2d)

    return out[:B]


# --------------------------------------------------------------------------
# Pure-JAX reference (mirrors the torch forward).
# --------------------------------------------------------------------------
def _ref_forward(time, freqs, w_in, b_in, w_out, b_out):
    args = jnp.outer(time, freqs)
    emb = jnp.concatenate([jnp.cos(args), jnp.sin(args)], axis=-1)
    h = emb @ w_in.T + b_in
    h = h * jax.nn.sigmoid(h)                        # SiLU
    return h @ w_out.T + b_out


def _get_freqs(half, max_period=10000.0):
    # standard diffusion timestep frequencies: max_period ** (-i/half)
    # TODO(synk): mirror the exact `get_freqs` helper if it differs from this.
    return jnp.exp(-math.log(max_period) *
                   jnp.arange(half, dtype=jnp.float32) / half)


# --------------------------------------------------------------------------
if __name__ == "__main__":
    model_dim = 256          # -> half = 128 (lane-dense)
    time_dim = 512           # multiple of 128 (lane-dense output)
    batch = 8

    key = jax.random.PRNGKey(0)
    k_t, k_wi, k_bi, k_wo, k_bo = jax.random.split(key, 5)

    time = 1000.0 * jax.random.uniform(k_t, (batch,), jnp.float32)
    freqs = _get_freqs(model_dim // 2)

    w_in = jax.random.normal(k_wi, (time_dim, model_dim), jnp.float32) \
        / math.sqrt(model_dim)
    b_in = 0.02 * jax.random.normal(k_bi, (time_dim,), jnp.float32)
    w_out = jax.random.normal(k_wo, (time_dim, time_dim), jnp.float32) \
        / math.sqrt(time_dim)
    b_out = 0.02 * jax.random.normal(k_bo, (time_dim,), jnp.float32)

    out = time_embeddings(time, freqs, w_in, b_in, w_out, b_out)
    jax.block_until_ready(out)

    ref = _ref_forward(time, freqs, w_in, b_in, w_out, b_out)
    np.testing.assert_allclose(np.asarray(out), np.asarray(ref),
                               rtol=1e-4, atol=1e-4)

    print("KERNEL_OK")
</pallas_src>

<mosaic_0001>
module attributes {stable_mosaic.version = 11 : i64} {
  func.func @_time_embed_kernel(%arg0: i32, %arg1: memref<8x1xf32, #tpu.memory_space<vmem>>, %arg2: memref<1x128xf32, #tpu.memory_space<vmem>>, %arg3: memref<128x512xf32, #tpu.memory_space<vmem>>, %arg4: memref<128x512xf32, #tpu.memory_space<vmem>>, %arg5: memref<1x512xf32, #tpu.memory_space<vmem>>, %arg6: memref<512x512xf32, #tpu.memory_space<vmem>>, %arg7: memref<1x512xf32, #tpu.memory_space<vmem>>, %arg8: memref<8x512xf32, #tpu.memory_space<vmem>>) attributes {dimension_semantics = [#tpu.dimension_semantics<parallel>], iteration_bounds = array<i64: 1>, scalar_prefetch = 0 : i64, scratch_operands = 0 : i64, tpu.core_type = #tpu.core_type<tc>, window_params = [{transform_indices = @transform_0, window_bounds = array<i64: 8, 1>}, {pipeline_mode = #tpu.pipeline_mode<synchronous>, transform_indices = @transform_1, window_bounds = array<i64: 1, 128>}, {pipeline_mode = #tpu.pipeline_mode<synchronous>, transform_indices = @transform_2, window_bounds = array<i64: 128, 512>}, {pipeline_mode = #tpu.pipeline_mode<synchronous>, transform_indices = @transform_3, window_bounds = array<i64: 128, 512>}, {pipeline_mode = #tpu.pipeline_mode<synchronous>, transform_indices = @transform_4, window_bounds = array<i64: 1, 512>}, {pipeline_mode = #tpu.pipeline_mode<synchronous>, transform_indices = @transform_5, window_bounds = array<i64: 512, 512>}, {pipeline_mode = #tpu.pipeline_mode<synchronous>, transform_indices = @transform_6, window_bounds = array<i64: 1, 512>}, {transform_indices = @transform_7, window_bounds = array<i64: 8, 512>}]} {
    %c0 = arith.constant 0 : index
    %c0_0 = arith.constant 0 : index
    %0 = vector.load %arg1[%c0, %c0_0] : memref<8x1xf32, #tpu.memory_space<vmem>>, vector<8x1xf32>
    %c0_1 = arith.constant 0 : index
    %c0_2 = arith.constant 0 : index
    %1 = vector.load %arg2[%c0_1, %c0_2] : memref<1x128xf32, #tpu.memory_space<vmem>>, vector<1x128xf32>
    %2 = vector.broadcast %0 : vector<8x1xf32> to vector<8x128xf32>
    %3 = vector.broadcast %1 : vector<1x128xf32> to vector<8x128xf32>
    %4 = arith.mulf %2, %3 : vector<8x128xf32>
    %5 = math.cos %4 : vector<8x128xf32>
    %6 = math.sin %4 : vector<8x128xf32>
    %c0_3 = arith.constant 0 : index
    %c0_4 = arith.constant 0 : index
    %7 = vector.load %arg3[%c0_3, %c0_4] : memref<128x512xf32, #tpu.memory_space<vmem>>, vector<128x512xf32>
    %cst = arith.constant dense<0.000000e+00> : vector<8x512xf32>
    %8 = tpu.matmul %5, %7, %cst {dimension_numbers = #tpu.dot_dimension_numbers<[1], [0], [0], [1], [0, 0, 1, 1], [], []>} : vector<8x128xf32>, vector<128x512xf32>, vector<8x512xf32> -> vector<8x512xf32>
    %c0_5 = arith.constant 0 : index
    %c0_6 = arith.constant 0 : index
    %9 = vector.load %arg4[%c0_5, %c0_6] : memref<128x512xf32, #tpu.memory_space<vmem>>, vector<128x512xf32>
    %cst_7 = arith.constant dense<0.000000e+00> : vector<8x512xf32>
    %10 = tpu.matmul %6, %9, %cst_7 {dimension_numbers = #tpu.dot_dimension_numbers<[1], [0], [0], [1], [0, 0, 1, 1], [], []>} : vector<8x128xf32>, vector<128x512xf32>, vector<8x512xf32> -> vector<8x512xf32>
    %11 = arith.addf %8, %10 : vector<8x512xf32>
    %c0_8 = arith.constant 0 : index
    %c0_9 = arith.constant 0 : index
    %12 = vector.load %arg5[%c0_8, %c0_9] : memref<1x512xf32, #tpu.memory_space<vmem>>, vector<1x512xf32>
    %13 = vector.broadcast %12 : vector<1x512xf32> to vector<8x512xf32>
    %14 = arith.addf %11, %13 : vector<8x512xf32>
    %cst_10 = arith.constant 0.000000e+00 : f32
    %15 = vector.broadcast %cst_10 : f32 to vector<8x512xf32>
    %16 = arith.subf %15, %14 : vector<8x512xf32>
    %17 = math.exp %16 : vector<8x512xf32>
    %cst_11 = arith.constant 1.000000e+00 : f32
    %18 = vector.broadcast %cst_11 : f32 to vector<8x512xf32>
    %19 = arith.addf %18, %17 : vector<8x512xf32>
    %cst_12 = arith.constant 1.000000e+00 : f32
    %20 = vector.broadcast %cst_12 : f32 to vector<8x512xf32>
    %21 = arith.divf %20, %19 : vector<8x512xf32>
    %22 = arith.mulf %14, %21 : vector<8x512xf32>
    %c0_13 = arith.constant 0 : index
    %c0_14 = arith.constant 0 : index
    %23 = vector.load %arg6[%c0_13, %c0_14] : memref<512x512xf32, #tpu.memory_space<vmem>>, vector<512x512xf32>
    %cst_15 = arith.constant dense<0.000000e+00> : vector<8x512xf32>
    %24 = tpu.matmul %22, %23, %cst_15 {dimension_numbers = #tpu.dot_dimension_numbers<[1], [0], [0], [1], [0, 0, 1, 1], [], []>} : vector<8x512xf32>, vector<512x512xf32>, vector<8x512xf32> -> vector<8x512xf32>
    %c0_16 = arith.constant 0 : index
    %c0_17 = arith.constant 0 : index
    %25 = vector.load %arg7[%c0_16, %c0_17] : memref<1x512xf32, #tpu.memory_space<vmem>>, vector<1x512xf32>
    %26 = vector.broadcast %25 : vector<1x512xf32> to vector<8x512xf32>
    %27 = arith.addf %24, %26 : vector<8x512xf32>
    %c0_18 = arith.constant 0 : index
    %c0_19 = arith.constant 0 : index
    %28 = vector.load %arg8[%c0_18, %c0_19] : memref<8x512xf32, #tpu.memory_space<vmem>>, vector<8x512xf32>
    tpu.vector_store %arg8[%c0_18, %c0_19], %27 {strides = array<i32>} : memref<8x512xf32, #tpu.memory_space<vmem>>, vector<8x512xf32>,
    return
  }
  func.func @transform_0(%arg0: i32) -> (i32, i32) {
    %c0_i32 = arith.constant 0 : i32
    %c0_i32_0 = arith.constant 0 : i32
    return %arg0, %c0_i32 : i32, i32
  }
  func.func @transform_1(%arg0: i32) -> (i32, i32) {
    %c0_i32 = arith.constant 0 : i32
    %c0_i32_0 = arith.constant 0 : i32
    %c0_i32_1 = arith.constant 0 : i32
    return %c0_i32, %c0_i32_0 : i32, i32
  }
  func.func @transform_2(%arg0: i32) -> (i32, i32) {
    %c0_i32 = arith.constant 0 : i32
    %c0_i32_0 = arith.constant 0 : i32
    %c0_i32_1 = arith.constant 0 : i32
    return %c0_i32, %c0_i32_0 : i32, i32
  }
  func.func @transform_3(%arg0: i32) -> (i32, i32) {
    %c0_i32 = arith.constant 0 : i32
    %c0_i32_0 = arith.constant 0 : i32
    %c0_i32_1 = arith.constant 0 : i32
    return %c0_i32, %c0_i32_0 : i32, i32
  }
  func.func @transform_4(%arg0: i32) -> (i32, i32) {
    %c0_i32 = arith.constant 0 : i32
    %c0_i32_0 = arith.constant 0 : i32
    %c0_i32_1 = arith.constant 0 : i32
    return %c0_i32, %c0_i32_0 : i32, i32
  }
  func.func @transform_5(%arg0: i32) -> (i32, i32) {
    %c0_i32 = arith.constant 0 : i32
    %c0_i32_0 = arith.constant 0 : i32
    %c0_i32_1 = arith.constant 0 : i32
    return %c0_i32, %c0_i32_0 : i32, i32
  }
  func.func @transform_6(%arg0: i32) -> (i32, i32) {
    %c0_i32 = arith.constant 0 : i32
    %c0_i32_0 = arith.constant 0 : i32
    %c0_i32_1 = arith.constant 0 : i32
    return %c0_i32, %c0_i32_0 : i32, i32
  }
  func.func @transform_7(%arg0: i32) -> (i32, i32) {
    %c0_i32 = arith.constant 0 : i32
    %c0_i32_0 = arith.constant 0 : i32
    return %arg0, %c0_i32 : i32, i32
  }
}

</mosaic_0001>

<llo_original>
// kernel: tpu_custom_call.1
$region0: #{tpu_custom_call.1}
  #allocation0 [shape = 'u32[]', space=smem, size = 0x4, offset = 0x4, fixed_abs, tag = 'smem constant byte address 0x4 - core index']
  #allocation1 [shape = 'u32[144,128]{1,0:T(1,128)}', space=vmem, size = 0x12000, scoped, tag = 'internal scratch']
  %s0 = inlined_call_operand.vmem [shape: f32[8,1], index: 0, kind: input, shape index: {}]
  %s1 = inlined_call_operand.vmem [shape: f32[1,128], index: 1, kind: input, shape index: {}]
  %s2 = inlined_call_operand.hbm [shape: f32[128,512], index: 2, kind: input, shape index: {}]
  %s3 = inlined_call_operand.hbm [shape: f32[128,512], index: 3, kind: input, shape index: {}]
  %s4 = inlined_call_operand.vmem [shape: f32[1,512], index: 4, kind: input, shape index: {}]
  %s5 = inlined_call_operand.hbm [shape: f32[512,512], index: 5, kind: input, shape index: {}]
  %s6 = inlined_call_operand.vmem [shape: f32[1,512], index: 6, kind: input, shape index: {}]
  %s7 = inlined_call_operand.hbm [shape: f32[8,512], index: 7, kind: output, shape index: {}]
  %s8 = sld [smem:[#allocation0]]
  $region50: #{tpu_custom_call.1} parent=0
    _
  %s10 = ssub.s32 1, %s8
  %s11 = scalar_select 0, %s10, %s8
  $region1: #{tpu_custom_call.1} parent=0
    #allocation2 [shape = 'u8[262144]{0}', space=vmem, size = 0x40000, scoped, tag = 'input window, operand 2, single buffered']
    #allocation3 [shape = 's32[1]{0}', space=sflag, size = 0x4, scoped, tag = 'scoped memory for tpu_custom_call.1']
    #allocation4 [shape = 's32[1]{0}', space=sflag, size = 0x4, scoped, tag = 'scoped memory for tpu_custom_call.1']
    #allocation5 [shape = 'u8[262144]{0}', space=vmem, size = 0x40000, scoped, tag = 'input window, operand 3, single buffered']
    #allocation6 [shape = 's32[1]{0}', space=sflag, size = 0x4, scoped, tag = 'scoped memory for tpu_custom_call.1']
    #allocation7 [shape = 'u8[1048576]{0}', space=vmem, size = 0x100000, scoped, tag = 'input window, operand 5, single buffered']
    #allocation8 [shape = 'u8[16384]{0}', space=vmem, size = 0x4000, scoped, tag = 'output window, operand 0, single buffered']
    %12 = vsyncpa [#allocation3], 0
    %13 = vsyncpa [#allocation6], 0
    %14 = vsyncpa [#allocation4], 0
    // Predicated region
    $region2: #{tpu_custom_call.1} parent=1 // pred_check
      _
    $region3: #{tpu_custom_call.1} parent=1 // pred_check_branch
      %16 = sbr.rel (0) target = $region5
    $region4: #{tpu_custom_call.1} parent=1 // pred_region
      _
    $region5: #{tpu_custom_call.1} parent=1 // pred_fallthru
      _
    // Predicated region
    $region6: #{tpu_custom_call.1} parent=1 // pred_check
      _
    $region7: #{tpu_custom_call.1} parent=1 // pred_check_branch
      %18 = sbr.rel (0) target = $region9
    $region8: #{tpu_custom_call.1} parent=1 // pred_region
      _
    $region9: #{tpu_custom_call.1} parent=1 // pred_fallthru
      _
    // Predicated region
    $region10: #{tpu_custom_call.1} parent=1 // pred_check
      _
    $region11: #{tpu_custom_call.1} parent=1 // pred_check_branch
      %20 = sbr.rel (0) target = $region13
    $region12: #{tpu_custom_call.1} parent=1 // pred_region
      %s22 = ssub.s32 8192, 8192
      %23 = vsyncadd [#allocation3], %s22
      %s24 = sshll.u32 [#allocation2], 4
      %s25 = int_to_ptr.vmem [resolvable:$true] %s24
      %30 = dma.hbm_to_vmem [thread:$0]  %s2, 8192, %s25, [#allocation3], 512, 512, 32
    $region13: #{tpu_custom_call.1} parent=1 // pred_fallthru
      _
    // Predicated region
    $region14: #{tpu_custom_call.1} parent=1 // pred_check
      _
    $region15: #{tpu_custom_call.1} parent=1 // pred_check_branch
      %32 = sbr.rel (0) target = $region17
    $region16: #{tpu_custom_call.1} parent=1 // pred_region
      %s34 = ssub.s32 8192, 8192
      %35 = vsyncadd [#allocation6], %s34
      %s36 = sshll.u32 [#allocation5], 4
      %s37 = int_to_ptr.vmem [resolvable:$true] %s36
      %42 = dma.hbm_to_vmem [thread:$0]  %s3, 8192, %s37, [#allocation6], 512, 512, 32
    $region17: #{tpu_custom_call.1} parent=1 // pred_fallthru
      _
    // Predicated region
    $region18: #{tpu_custom_call.1} parent=1 // pred_check
      _
    $region19: #{tpu_custom_call.1} parent=1 // pred_check_branch
      %44 = sbr.rel (0) target = $region21
    $region20: #{tpu_custom_call.1} parent=1 // pred_region
      _
    $region21: #{tpu_custom_call.1} parent=1 // pred_fallthru
      _
    // Predicated region
    $region22: #{tpu_custom_call.1} parent=1 // pred_check
      _
    $region23: #{tpu_custom_call.1} parent=1 // pred_check_branch
      %46 = sbr.rel (0) target = $region25
    $region24: #{tpu_custom_call.1} parent=1 // pred_region
      %s48 = ssub.s32 32768, 32768
      %49 = vsyncadd [#allocation6], %s48
      %s50 = sshll.u32 [#allocation7], 4
      %s51 = int_to_ptr.vmem [resolvable:$true] %s50
      %56 = dma.hbm_to_vmem [thread:$0]  %s5, 32768, %s51, [#allocation6], 512, 512, 32
    $region25: #{tpu_custom_call.1} parent=1 // pred_fallthru
      _
    // Predicated region
    $region26: #{tpu_custom_call.1} parent=1 // pred_check
      _
    $region27: #{tpu_custom_call.1} parent=1 // pred_check_branch
      %58 = sbr.rel (0) target = $region29
    $region28: #{tpu_custom_call.1} parent=1 // pred_region
      _
    $region29: #{tpu_custom_call.1} parent=1 // pred_fallthru
      _
    // Predicated region
    $region30: #{tpu_custom_call.1} parent=1 // pred_check
      _
    $region31: #{tpu_custom_call.1} parent=1 // pred_check_branch
      %60 = sbr.rel (0) target = $region33
    $region32: #{tpu_custom_call.1} parent=1 // pred_region
      %61 = dma.done [#allocation3], 8192
    $region33: #{tpu_custom_call.1} parent=1 // pred_fallthru
      _
    // Predicated region
    $region34: #{tpu_custom_call.1} parent=1 // pred_check
      _
    $region35: #{tpu_custom_call.1} parent=1 // pred_check_branch
      %63 = sbr.rel (0) target = $region37
    $region36: #{tpu_custom_call.1} parent=1 // pred_region
      %64 = dma.done [#allocation6], 8192
    $region37: #{tpu_custom_call.1} parent=1 // pred_fallthru
      _
    // Predicated region
    $region38: #{tpu_custom_call.1} parent=1 // pred_check
      _
    $region39: #{tpu_custom_call.1} parent=1 // pred_check_branch
      %66 = sbr.rel (0) target = $region41
    $region40: #{tpu_custom_call.1} parent=1 // pred_region
      %67 = dma.done [#allocation6], 32768
    $region41: #{tpu_custom_call.1} parent=1 // pred_fallthru
      _
    %v68 = vld [vmem:[%s0] sm:$0xff]
    %v69 = vld [vmem:[%s1] sm:$0x1]
    %71 = vset.pattern.permute.xlu0 0
    %72 = vperm.xlu0 %71, %v68
    %v73 = vpop.permute.xlu0 %72
    %v76 = vlaneseq
    %v77 = vshrl.u32 %v76, 7
    %v78 = vsub.s32 0, %v77
    %v79 = vrot.slane %v69, %v78
    %v81 = vmul.f32 %v73, %v79
    %v82 = vand.u32 2147483647, %v81
    %vm83 = vcmp.le.f32.partialorder %v82, 0.7853982
    %vm84 = vcmp.lt.s32.totalorder %v81, 0
    %v85 = vand.u32 %v81, 2139095040
    %v86 = vshrl.u32 %v85, 23
    %v87 = vsub.s32 %v86, 127
    %v88 = vand.u32 2147483647, %v81
    %v89 = vand.u32 %v88, 8388607
    %v90 = vor.u32 %v89, 8388608
    %v91 = vsub.s32 0, %v90
    %v92 = vadd.s32 %v87, 1
    %vm93 = vcmp.gt.s32.totalorder %v92, 0
    %v94 = vsel %vm93, %v92, 0
    %v95 = vshrl.u32 %v94, 5
    %v96 = vand.u32 %v94, 31
    %v97 = vsub.s32 32, %v96
    %v98 = vshrl.u32 683565275, %v97
    %v99 = vshll.u32 683565275, %v96
    %v100 = vshrl.u32 2475754826, %v97
    %v101 = vor.u32 %v99, %v100
    %v102 = vshll.u32 2475754826, %v96
    %v103 = vshrl.u32 2131351028, %v97
    %v104 = vor.u32 %v102, %v103
    %v105 = vshll.u32 2131351028, %v96
    %v106 = vshrl.u32 2102212464, %v97
    %v107 = vor.u32 %v105, %v106
    %v108 = vshll.u32 2102212464, %v96
    %v109 = vshrl.u32 920167782, %v97
    %v110 = vor.u32 %v108, %v109
    %v111 = vshll.u32 920167782, %v96
    %v112 = vshrl.u32 1326507024, %v97
    %v113 = vor.u32 %v111, %v112
    %vm114 = vcmp.lt.s32.totalorder %v95, 1
    %vm115 = vcmp.lt.s32.totalorder %v95, 2
    %vm116 = vcmp.lt.s32.totalorder %v95, 3
    %vm117 = vcmp.lt.s32.totalorder %v95, 4
    %v118 = vsel %vm114, %v98, %v101
    %v119 = vsel %vm117, %v107, 2102212464
    %v120 = vsel %vm116, %v104, %v119
    %v121 = vsel %vm115, %v118, %v120
    %v122 = vsel %vm114, %v101, %v104
    %v123 = vsel %vm117, %v110, 920167782
    %v124 = vsel %vm116, %v107, %v123
    %v125 = vsel %vm115, %v122, %v124
    %v126 = vsel %vm114, %v104, %v107
    %v127 = vsel %vm117, %v113, 1326507024
    %v128 = vsel %vm116, %v110, %v127
    %v129 = vsel %vm115, %v126, %v128
    %v130 = vshll.u32 %v90, 8
    %v131 = vmul.u32.u64.compose %v130, %v129
    %v132 = vextract.low.u32 %v131
    %v133 = vextract.high.u32 %v131
    %v134 = vmul.u32.u64.compose %v130, %v125
    %v135 = vextract.low.u32 %v134
    %v136 = vextract.high.u32 %v134
    %v137 = vmul.u32 %v130, %v121
    %v138 = vadd.s32 %v133, %v135
    %vm139 = vc.u32 %v133, %v135
    %v140 = vadd.s32 %v136, 1
    %v141 = vsel %vm139, %v140, %v136
    %v142 = vadd.s32 %v137, %v141
    %v143 = vadd.s32 %v142, 536870912
    %v144 = vshrl.u32 %v143, 30
    %v145 = vshll.u32 %v144, 30
    %v146 = vsub.s32 %v142, %v145
    %vm147 = vcmp.lt.s32.totalorder %v146, 0
    %v148 = vsub.s32 0, %v146
    %v149 = vsel %vm147, %v148, %v146
    %v150 = vclz %v149
    %v151 = vsub.s32 %v150, 2
    %vm152 = vcmp.gt.s32.totalorder 0, %v151
    %v153 = vsel %vm152, 0, %v151
    %v154 = vsub.s32 32, %v153
    %v155 = vshll.u32 %v146, %v153
    %v156 = vshrl.u32 %v138, %v154
    %v157 = vor.u32 %v155, %v156
    %v158 = vsub.s32 4294967266, %v153
    %v159 = vadd.s32 %v158, 127
    %v160 = vshll.u32 %v159, 23
    %v161 = vor.u32 4788187, %v160
    %v162 = vand.u32 2147483647, %v161
    %v164 = vcvt.s32.f32 %v157
    %v165 = vmul.f32 %v164, %v162
    %v166 = vxor.u32 %v165, 2147483648
    %v167 = vsel %vm84, %v166, %v165
    %v168 = vsub.s32 4, %v144
    %v169 = vsel %vm84, %v168, %v144
    %v170 = vsel %vm83, %v81, %v167
    %v171 = vsel %vm83, 0, %v169
    %v172 = vcosq.f32.pop %v170
    %v173 = vsinq.f32.pop %v170
    %vm174 = vweird.f32 %v81
    %v175 = vand.u32 %v171, 3
    %vm176 = vcmp.lt.s32.totalorder %v175, 2
    %vm177 = vcmp.eq.s32.totalorder %v175, 0
    %v178 = vxor.u32 %v173, 2147483648
    %v179 = vsel %vm177, %v172, %v178
    %vm180 = vcmp.eq.s32.totalorder %v175, 2
    %v181 = vxor.u32 %v172, 2147483648
    %v182 = vsel %vm180, %v181, %v173
    %v183 = vsel %vm176, %v179, %v182
    %v184 = vsel %vm174, nan, %v183
    %v185 = vand.u32 2147483647, %v81
    %vm186 = vcmp.le.f32.partialorder %v185, 0.7853982
    %vm187 = vcmp.lt.s32.totalorder %v81, 0
    %v188 = vand.u32 %v81, 2139095040
    %v189 = vshrl.u32 %v188, 23
    %v190 = vsub.s32 %v189, 127
    %v191 = vand.u32 2147483647, %v81
    %v192 = vand.u32 %v191, 8388607
    %v193 = vor.u32 %v192, 8388608
    %v194 = vsub.s32 0, %v193
    %v195 = vadd.s32 %v190, 1
    %vm196 = vcmp.gt.s32.totalorder %v195, 0
    %v197 = vsel %vm196, %v195, 0
    %v198 = vshrl.u32 %v197, 5
    %v199 = vand.u32 %v197, 31
    %v200 = vsub.s32 32, %v199
    %v201 = vshrl.u32 683565275, %v200
    %v202 = vshll.u32 683565275, %v199
    %v203 = vshrl.u32 2475754826, %v200
    %v204 = vor.u32 %v202, %v203
    %v205 = vshll.u32 2475754826, %v199
    %v206 = vshrl.u32 2131351028, %v200
    %v207 = vor.u32 %v205, %v206
    %v208 = vshll.u32 2131351028, %v199
    %v209 = vshrl.u32 2102212464, %v200
    %v210 = vor.u32 %v208, %v209
    %v211 = vshll.u32 2102212464, %v199
    %v212 = vshrl.u32 920167782, %v200
    %v213 = vor.u32 %v211, %v212
    %v214 = vshll.u32 920167782, %v199
    %v215 = vshrl.u32 1326507024, %v200
    %v216 = vor.u32 %v214, %v215
    %vm217 = vcmp.lt.s32.totalorder %v198, 1
    %vm218 = vcmp.lt.s32.totalorder %v198, 2
    %vm219 = vcmp.lt.s32.totalorder %v198, 3
    %vm220 = vcmp.lt.s32.totalorder %v198, 4
    %v221 = vsel %vm217, %v201, %v204
    %v222 = vsel %vm220, %v210, 2102212464
    %v223 = vsel %vm219, %v207, %v222
    %v224 = vsel %vm218, %v221, %v223
    %v225 = vsel %vm217, %v204, %v207
    %v226 = vsel %vm220, %v213, 920167782
    %v227 = vsel %vm219, %v210, %v226
    %v228 = vsel %vm218, %v225, %v227
    %v229 = vsel %vm217, %v207, %v210
    %v230 = vsel %vm220, %v216, 1326507024
    %v231 = vsel %vm219, %v213, %v230
    %v232 = vsel %vm218, %v229, %v231
    %v233 = vshll.u32 %v193, 8
    %v234 = vmul.u32.u64.compose %v233, %v232
    %v235 = vextract.low.u32 %v234
    %v236 = vextract.high.u32 %v234
    %v237 = vmul.u32.u64.compose %v233, %v228
    %v238 = vextract.low.u32 %v237
    %v239 = vextract.high.u32 %v237
    %v240 = vmul.u32 %v233, %v224
    %v241 = vadd.s32 %v236, %v238
    %vm242 = vc.u32 %v236, %v238
    %v243 = vadd.s32 %v239, 1
    %v244 = vsel %vm242, %v243, %v239
    %v245 = vadd.s32 %v240, %v244
    %v246 = vadd.s32 %v245, 536870912
    %v247 = vshrl.u32 %v246, 30
    %v248 = vshll.u32 %v247, 30
    %v249 = vsub.s32 %v245, %v248
    %vm250 = vcmp.lt.s32.totalorder %v249, 0
    %v251 = vsub.s32 0, %v249
    %v252 = vsel %vm250, %v251, %v249
    %v253 = vclz %v252
    %v254 = vsub.s32 %v253, 2
    %vm255 = vcmp.gt.s32.totalorder 0, %v254
    %v256 = vsel %vm255, 0, %v254
    %v257 = vsub.s32 32, %v256
    %v258 = vshll.u32 %v249, %v256
    %v259 = vshrl.u32 %v241, %v257
    %v260 = vor.u32 %v258, %v259
    %v261 = vsub.s32 4294967266, %v256
    %v262 = vadd.s32 %v261, 127
    %v263 = vshll.u32 %v262, 23
    %v264 = vor.u32 4788187, %v263
    %v265 = vand.u32 2147483647, %v264
    %v267 = vcvt.s32.f32 %v260
    %v268 = vmul.f32 %v267, %v265
    %v269 = vxor.u32 %v268, 2147483648
    %v270 = vsel %vm187, %v269, %v268
    %v271 = vsub.s32 4, %v247
    %v272 = vsel %vm187, %v271, %v247
    %v273 = vsel %vm186, %v81, %v270
    %v274 = vsel %vm186, 0, %v272
    %v275 = vcosq.f32.pop %v273
    %v276 = vsinq.f32.pop %v273
    %vm277 = vweird.f32 %v81
    %v278 = vadd.s32 %v274, 3
    %v279 = vand.u32 %v278, 3
    %vm280 = vcmp.lt.s32.totalorder %v279, 2
    %vm281 = vcmp.eq.s32.totalorder %v279, 0
    %v282 = vxor.u32 %v276, 2147483648
    %v283 = vsel %vm281, %v275, %v282
    %vm284 = vcmp.eq.s32.totalorder %v279, 2
    %v285 = vxor.u32 %v275, 2147483648
    %v286 = vsel %vm284, %v285, %v276
    %v287 = vsel %vm280, %v283, %v286
    %v288 = vsel %vm277, nan, %v287
    %v289 = vld [vmem:[#allocation2] sm:$0xff]
    %v290 = vld [vmem:[#allocation2 + $0x8] sm:$0xff]
    %v291 = vld [vmem:[#allocation2 + $0x10] sm:$0xff]
    %v292 = vld [vmem:[#allocation2 + $0x18] sm:$0xff]
    %v293 = vld [vmem:[#allocation2 + $0x20] sm:$0xff]
    %v294 = vld [vmem:[#allocation2 + $0x28] sm:$0xff]
    %v295 = vld [vmem:[#allocation2 + $0x30] sm:$0xff]
    %v296 = vld [vmem:[#allocation2 + $0x38] sm:$0xff]
    %v297 = vld [vmem:[#allocation2 + $0x40] sm:$0xff]
    %v298 = vld [vmem:[#allocation2 + $0x48] sm:$0xff]
    %v299 = vld [vmem:[#allocation2 + $0x50] sm:$0xff]
    %v300 = vld [vmem:[#allocation2 + $0x58] sm:$0xff]
    %v301 = vld [vmem:[#allocation2 + $0x60] sm:$0xff]
    %v302 = vld [vmem:[#allocation2 + $0x68] sm:$0xff]
    %v303 = vld [vmem:[#allocation2 + $0x70] sm:$0xff]
    %v304 = vld [vmem:[#allocation2 + $0x78] sm:$0xff]
    %v305 = vld [vmem:[#allocation2 + $0x80] sm:$0xff]
    %v306 = vld [vmem:[#allocation2 + $0x88] sm:$0xff]
    %v307 = vld [vmem:[#allocation2 + $0x90] sm:$0xff]
    %v308 = vld [vmem:[#allocation2 + $0x98] sm:$0xff]
    %v309 = vld [vmem:[#allocation2 + $0xa0] sm:$0xff]
    %v310 = vld [vmem:[#allocation2 + $0xa8] sm:$0xff]
    %v311 = vld [vmem:[#allocation2 + $0xb0] sm:$0xff]
    %v312 = vld [vmem:[#allocation2 + $0xb8] sm:$0xff]
    %v313 = vld [vmem:[#allocation2 + $0xc0] sm:$0xff]
    %v314 = vld [vmem:[#allocation2 + $0xc8] sm:$0xff]
    %v315 = vld [vmem:[#allocation2 + $0xd0] sm:$0xff]
    %v316 = vld [vmem:[#allocation2 + $0xd8] sm:$0xff]
    %v317 = vld [vmem:[#allocation2 + $0xe0] sm:$0xff]
    %v318 = vld [vmem:[#allocation2 + $0xe8] sm:$0xff]
    %v319 = vld [vmem:[#allocation2 + $0xf0] sm:$0xff]
    %v320 = vld [vmem:[#allocation2 + $0xf8] sm:$0xff]
    %v321 = vld [vmem:[#allocation2 + $0x100] sm:$0xff]
    %v322 = vld [vmem:[#allocation2 + $0x108] sm:$0xff]
    %v323 = vld [vmem:[#allocation2 + $0x110] sm:$0xff]
    %v324 = vld [vmem:[#allocation2 + $0x118] sm:$0xff]
    %v325 = vld [vmem:[#allocation2 + $0x120] sm:$0xff]
    %v326 = vld [vmem:[#allocation2 + $0x128] sm:$0xff]
    %v327 = vld [vmem:[#allocation2 + $0x130] sm:$0xff]
    %v328 = vld [vmem:[#allocation2 + $0x138] sm:$0xff]
    %v329 = vld [vmem:[#allocation2 + $0x140] sm:$0xff]
    %v330 = vld [vmem:[#allocation2 + $0x148] sm:$0xff]
    %v331 = vld [vmem:[#allocation2 + $0x150] sm:$0xff]
    %v332 = vld [vmem:[#allocation2 + $0x158] sm:$0xff]
    %v333 = vld [vmem:[#allocation2 + $0x160] sm:$0xff]
    %v334 = vld [vmem:[#allocation2 + $0x168] sm:$0xff]
    %v335 = vld [vmem:[#allocation2 + $0x170] sm:$0xff]
    %v336 = vld [vmem:[#allocation2 + $0x178] sm:$0xff]
    %v337 = vld [vmem:[#allocation2 + $0x180] sm:$0xff]
    %v338 = vld [vmem:[#allocation2 + $0x188] sm:$0xff]
    %v339 = vld [vmem:[#allocation2 + $0x190] sm:$0xff]
    %v340 = vld [vmem:[#allocation2 + $0x198] sm:$0xff]
    %v341 = vld [vmem:[#allocation2 + $0x1a0] sm:$0xff]
    %v342 = vld [vmem:[#allocation2 + $0x1a8] sm:$0xff]
    %v343 = vld [vmem:[#allocation2 + $0x1b0] sm:$0xff]
    %v344 = vld [vmem:[#allocation2 + $0x1b8] sm:$0xff]
    %v345 = vld [vmem:[#allocation2 + $0x1c0] sm:$0xff]
    %v346 = vld [vmem:[#allocation2 + $0x1c8] sm:$0xff]
    %v347 = vld [vmem:[#allocation2 + $0x1d0] sm:$0xff]
    %v348 = vld [vmem:[#allocation2 + $0x1d8] sm:$0xff]
    %v349 = vld [vmem:[#allocation2 + $0x1e0] sm:$0xff]
    %v350 = vld [vmem:[#allocation2 + $0x1e8] sm:$0xff]
    %v351 = vld [vmem:[#allocation2 + $0x1f0] sm:$0xff]
    %v352 = vld [vmem:[#allocation2 + $0x1f8] sm:$0xff]
    %v353 = vld [vmem:[#allocation5] sm:$0xff]
    %v354 = vld [vmem:[#allocation5 + $0x8] sm:$0xff]
    %v355 = vld [vmem:[#allocation5 + $0x10] sm:$0xff]
    %v356 = vld [vmem:[#allocation5 + $0x18] sm:$0xff]
    %v357 = vld [vmem:[#allocation5 + $0x20] sm:$0xff]
    %v358 = vld [vmem:[#allocation5 + $0x28] sm:$0xff]
    %v359 = vld [vmem:[#allocation5 + $0x30] sm:$0xff]
    %v360 = vld [vmem:[#allocation5 + $0x38] sm:$0xff]
    %v361 = vld [vmem:[#allocation5 + $0x40] sm:$0xff]
    %v362 = vld [vmem:[#allocation5 + $0x48] sm:$0xff]
    %v363 = vld [vmem:[#allocation5 + $0x50] sm:$0xff]
    %v364 = vld [vmem:[#allocation5 + $0x58] sm:$0xff]
    %v365 = vld [vmem:[#allocation5 + $0x60] sm:$0xff]
    %v366 = vld [vmem:[#allocation5 + $0x68] sm:$0xff]
    %v367 = vld [vmem:[#allocation5 + $0x70] sm:$0xff]
    %v368 = vld [vmem:[#allocation5 + $0x78] sm:$0xff]
    %v369 = vld [vmem:[#allocation5 + $0x80] sm:$0xff]
    %v370 = vld [vmem:[#allocation5 + $0x88] sm:$0xff]
    %v371 = vld [vmem:[#allocation5 + $0x90] sm:$0xff]
    %v372 = vld [vmem:[#allocation5 + $0x98] sm:$0xff]
    %v373 = vld [vmem:[#allocation5 + $0xa0] sm:$0xff]
    %v374 = vld [vmem:[#allocation5 + $0xa8] sm:$0xff]
    %v375 = vld [vmem:[#allocation5 + $0xb0] sm:$0xff]
    %v376 = vld [vmem:[#allocation5 + $0xb8] sm:$0xff]
    %v377 = vld [vmem:[#allocation5 + $0xc0] sm:$0xff]
    %v378 = vld [vmem:[#allocation5 + $0xc8] sm:$0xff]
    %v379 = vld [vmem:[#allocation5 + $0xd0] sm:$0xff]
    %v380 = vld [vmem:[#allocation5 + $0xd8] sm:$0xff]
    %v381 = vld [vmem:[#allocation5 + $0xe0] sm:$0xff]
    %v382 = vld [vmem:[#allocation5 + $0xe8] sm:$0xff]
    %v383 = vld [vmem:[#allocation5 + $0xf0] sm:$0xff]
    %v384 = vld [vmem:[#allocation5 + $0xf8] sm:$0xff]
    %v385 = vld [vmem:[#allocation5 + $0x100] sm:$0xff]
    %v386 = vld [vmem:[#allocation5 + $0x108] sm:$0xff]
    %v387 = vld [vmem:[#allocation5 + $0x110] sm:$0xff]
    %v388 = vld [vmem:[#allocation5 + $0x118] sm:$0xff]
    %v389 = vld [vmem:[#allocation5 + $0x120] sm:$0xff]
    %v390 = vld [vmem:[#allocation5 + $0x128] sm:$0xff]
    %v391 = vld [vmem:[#allocation5 + $0x130] sm:$0xff]
    %v392 = vld [vmem:[#allocation5 + $0x138] sm:$0xff]
    %v393 = vld [vmem:[#allocation5 + $0x140] sm:$0xff]
    %v394 = vld [vmem:[#allocation5 + $0x148] sm:$0xff]
    %v395 = vld [vmem:[#allocation5 + $0x150] sm:$0xff]
    %v396 = vld [vmem:[#allocation5 + $0x158] sm:$0xff]
    %v397 = vld [vmem:[#allocation5 + $0x160] sm:$0xff]
    %v398 = vld [vmem:[#allocation5 + $0x168] sm:$0xff]
    %v399 = vld [vmem:[#allocation5 + $0x170] sm:$0xff]
    %v400 = vld [vmem:[#allocation5 + $0x178] sm:$0xff]
    %v401 = vld [vmem:[#allocation5 + $0x180] sm:$0xff]
    %v402 = vld [vmem:[#allocation5 + $0x188] sm:$0xff]
    %v403 = vld [vmem:[#allocation5 + $0x190] sm:$0xff]
    %v404 = vld [vmem:[#allocation5 + $0x198] sm:$0xff]
    %v405 = vld [vmem:[#allocation5 + $0x1a0] sm:$0xff]
    %v406 = vld [vmem:[#allocation5 + $0x1a8] sm:$0xff]
    %v407 = vld [vmem:[#allocation5 + $0x1b0] sm:$0xff]
    %v408 = vld [vmem:[#allocation5 + $0x1b8] sm:$0xff]
    %v409 = vld [vmem:[#allocation5 + $0x1c0] sm:$0xff]
    %v410 = vld [vmem:[#allocation5 + $0x1c8] sm:$0xff]
    %v411 = vld [vmem:[#allocation5 + $0x1d0] sm:$0xff]
    %v412 = vld [vmem:[#allocation5 + $0x1d8] sm:$0xff]
    %v413 = vld [vmem:[#allocation5 + $0x1e0] sm:$0xff]
    %v414 = vld [vmem:[#allocation5 + $0x1e8] sm:$0xff]
    %v415 = vld [vmem:[#allocation5 + $0x1f0] sm:$0xff]
    %v416 = vld [vmem:[#allocation5 + $0x1f8] sm:$0xff]
    %417 = vmatprep.subr.mxu0 %v354
    %418 = vmatpush1.msra.mxu0 %v353
    %419 = vmatprep.subr.mxu0 %v358
    %420 = vmatpush1.msra.mxu0 %v357
    %421 = vmatprep.subr.mxu0 %v362
    %422 = vmatpush1.msra.mxu0 %v361
    %423 = vmatprep.subr.mxu0 %v366
    %424 = vmatpush1.msra.mxu0 %v365
    %425 = vmatprep.subr.mxu0 %v370
    %426 = vmatpush1.msra.mxu0 %v369
    %427 = vmatprep.subr.mxu0 %v374
    %428 = vmatpush1.msra.mxu0 %v373
    %429 = vmatprep.subr.mxu0 %v378
    %430 = vmatpush1.msra.mxu0 %v377
    %431 = vmatprep.subr.mxu0 %v382
    %432 = vmatpush1.msra.mxu0 %v381
    %433 = vmatprep.subr.mxu0 %v386
    %434 = vmatpush1.msra.mxu0 %v385
    %435 = vmatprep.subr.mxu0 %v390
    %436 = vmatpush1.msra.mxu0 %v389
    %437 = vmatprep.subr.mxu0 %v394
    %438 = vmatpush1.msra.mxu0 %v393
    %439 = vmatprep.subr.mxu0 %v398
    %440 = vmatpush1.msra.mxu0 %v397
    %441 = vmatprep.subr.mxu0 %v402
    %442 = vmatpush1.msra.mxu0 %v401
    %443 = vmatprep.subr.mxu0 %v406
    %444 = vmatpush1.msra.mxu0 %v405
    %445 = vmatprep.subr.mxu0 %v410
    %446 = vmatpush1.msra.mxu0 %v409
    %447 = vmatprep.subr.mxu0 %v414
    %448 = vmatpush1.msra.mxu0 %v413
    %449 = vmatprep.subr.mxu0 0.0
    %450 = vmatpush1.msra.mxu0 0.0
    %451 = vmatprep.subr.mxu0 0.0
    %452 = vmatpush1.msra.mxu0 0.0
    %453 = vmatprep.subr.mxu0 0.0
    %454 = vmatpush1.msra.mxu0 0.0
    %455 = vmatprep.subr.mxu0 0.0
    %456 = vmatpush1.msra.mxu0 0.0
    %457 = vmatprep.subr.mxu0 0.0
    %458 = vmatpush1.msra.mxu0 0.0
    %459 = vmatprep.subr.mxu0 0.0
    %460 = vmatpush1.msra.mxu0 0.0
    %461 = vmatprep.subr.mxu0 0.0
    %462 = vmatpush1.msra.mxu0 0.0
    %463 = vmatprep.subr.mxu0 0.0
    %464 = vmatpush1.msra.mxu0 0.0
    %465 = vmatprep.subr.mxu0 0.0
    %466 = vmatpush1.msra.mxu0 0.0
    %467 = vmatprep.subr.mxu0 0.0
    %468 = vmatpush1.msra.mxu0 0.0
    %469 = vmatprep.subr.mxu0 0.0
    %470 = vmatpush1.msra.mxu0 0.0
    %471 = vmatprep.subr.mxu0 0.0
    %472 = vmatpush1.msra.mxu0 0.0
    %473 = vmatprep.subr.mxu0 0.0
    %474 = vmatpush1.msra.mxu0 0.0
    %475 = vmatprep.subr.mxu0 0.0
    %476 = vmatpush1.msra.mxu0 0.0
    %477 = vmatprep.subr.mxu0 0.0
    %478 = vmatpush1.msra.mxu0 0.0
    %479 = vmatprep.subr.mxu0 0.0
    %480 = vmatpush1.msra.mxu0 0.0
    %481 = vmatprep.mubr.f32.mxu0 0.0
    %482 = vmatmul.mubr.f32.gmra.mrb[0].mxu0 %v288
    %v483 = vpop.f32.mrb[0].mxu0
    %v484 = vadd.f32 0.0, %v483
    %v485 = vpop.f32.mrb[0].mxu0
    %v486 = vadd.f32 0.0, %v485
    %487 = vdwg.mxu0
    %488 = vmatprep.subr.mxu0 %v356
    %489 = vmatpush1.msra.mxu0 %v355
    %490 = vmatprep.subr.mxu0 %v360
    %491 = vmatpush1.msra.mxu0 %v359
    %492 = vmatprep.subr.mxu0 %v364
    %493 = vmatpush1.msra.mxu0 %v363
    %494 = vmatprep.subr.mxu0 %v368
    %495 = vmatpush1.msra.mxu0 %v367
    %496 = vmatprep.subr.mxu0 %v372
    %497 = vmatpush1.msra.mxu0 %v371
    %498 = vmatprep.subr.mxu0 %v376
    %499 = vmatpush1.msra.mxu0 %v375
    %500 = vmatprep.subr.mxu0 %v380
    %501 = vmatpush1.msra.mxu0 %v379
    %502 = vmatprep.subr.mxu0 %v384
    %503 = vmatpush1.msra.mxu0 %v383
    %504 = vmatprep.subr.mxu0 %v388
    %505 = vmatpush1.msra.mxu0 %v387
    %506 = vmatprep.subr.mxu0 %v392
    %507 = vmatpush1.msra.mxu0 %v391
    %508 = vmatprep.subr.mxu0 %v396
    %509 = vmatpush1.msra.mxu0 %v395
    %510 = vmatprep.subr.mxu0 %v400
    %511 = vmatpush1.msra.mxu0 %v399
    %512 = vmatprep.subr.mxu0 %v404
    %513 = vmatpush1.msra.mxu0 %v403
    %514 = vmatprep.subr.mxu0 %v408
    %515 = vmatpush1.msra.mxu0 %v407
    %516 = vmatprep.subr.mxu0 %v412
    %517 = vmatpush1.msra.mxu0 %v411
    %518 = vmatprep.subr.mxu0 %v416
    %519 = vmatpush1.msra.mxu0 %v415
    %520 = vmatprep.subr.mxu0 0.0
    %521 = vmatpush1.msra.mxu0 0.0
    %522 = vmatprep.subr.mxu0 0.0
    %523 = vmatpush1.msra.mxu0 0.0
    %524 = vmatprep.subr.mxu0 0.0
    %525 = vmatpush1.msra.mxu0 0.0
    %526 = vmatprep.subr.mxu0 0.0
    %527 = vmatpush1.msra.mxu0 0.0
    %528 = vmatprep.subr.mxu0 0.0
    %529 = vmatpush1.msra.mxu0 0.0
    %530 = vmatprep.subr.mxu0 0.0
    %531 = vmatpush1.msra.mxu0 0.0
    %532 = vmatprep.subr.mxu0 0.0
    %533 = vmatpush1.msra.mxu0 0.0
    %534 = vmatprep.subr.mxu0 0.0
    %535 = vmatpush1.msra.mxu0 0.0
    %536 = vmatprep.subr.mxu0 0.0
    %537 = vmatpush1.msra.mxu0 0.0
    %538 = vmatprep.subr.mxu0 0.0
    %539 = vmatpush1.msra.mxu0 0.0
    %540 = vmatprep.subr.mxu0 0.0
    %541 = vmatpush1.msra.mxu0 0.0
    %542 = vmatprep.subr.mxu0 0.0
    %543 = vmatpush1.msra.mxu0 0.0
    %544 = vmatprep.subr.mxu0 0.0
    %545 = vmatpush1.msra.mxu0 0.0
    %546 = vmatprep.subr.mxu0 0.0
    %547 = vmatpush1.msra.mxu0 0.0
    %548 = vmatprep.subr.mxu0 0.0
    %549 = vmatpush1.msra.mxu0 0.0
    %550 = vmatprep.subr.mxu0 0.0
    %551 = vmatpush1.msra.mxu0 0.0
    %552 = vmatprep.mubr.f32.mxu0 0.0
    %553 = vmatmul.mubr.f32.gmra.mrb[0].mxu0 %v288
    %v554 = vpop.f32.mrb[0].mxu0
    %v555 = vadd.f32 0.0, %v554
    %v556 = vpop.f32.mrb[0].mxu0
    %v557 = vadd.f32 0.0, %v556
    %558 = vdwg.mxu0
    %559 = vmatprep.subr.mxu0 %v290
    %560 = vmatpush1.msra.mxu0 %v289
    %561 = vmatprep.subr.mxu0 %v294
    %562 = vmatpush1.msra.mxu0 %v293
    %563 = vmatprep.subr.mxu0 %v298
    %564 = vmatpush1.msra.mxu0 %v297
    %565 = vmatprep.subr.mxu0 %v302
    %566 = vmatpush1.msra.mxu0 %v301
    %567 = vmatprep.subr.mxu0 %v306
    %568 = vmatpush1.msra.mxu0 %v305
    %569 = vmatprep.subr.mxu0 %v310
    %570 = vmatpush1.msra.mxu0 %v309
    %571 = vmatprep.subr.mxu0 %v314
    %572 = vmatpush1.msra.mxu0 %v313
    %573 = vmatprep.subr.mxu0 %v318
    %574 = vmatpush1.msra.mxu0 %v317
    %575 = vmatprep.subr.mxu0 %v322
    %576 = vmatpush1.msra.mxu0 %v321
    %577 = vmatprep.subr.mxu0 %v326
    %578 = vmatpush1.msra.mxu0 %v325
    %579 = vmatprep.subr.mxu0 %v330
    %580 = vmatpush1.msra.mxu0 %v329
    %581 = vmatprep.subr.mxu0 %v334
    %582 = vmatpush1.msra.mxu0 %v333
    %583 = vmatprep.subr.mxu0 %v338
    %584 = vmatpush1.msra.mxu0 %v337
    %585 = vmatprep.subr.mxu0 %v342
    %586 = vmatpush1.msra.mxu0 %v341
    %587 = vmatprep.subr.mxu0 %v346
    %588 = vmatpush1.msra.mxu0 %v345
    %589 = vmatprep.subr.mxu0 %v350
    %590 = vmatpush1.msra.mxu0 %v349
    %591 = vmatprep.subr.mxu0 0.0
    %592 = vmatpush1.msra.mxu0 0.0
    %593 = vmatprep.subr.mxu0 0.0
    %594 = vmatpush1.msra.mxu0 0.0
    %595 = vmatprep.subr.mxu0 0.0
    %596 = vmatpush1.msra.mxu0 0.0
    %597 = vmatprep.subr.mxu0 0.0
    %598 = vmatpush1.msra.mxu0 0.0
    %599 = vmatprep.subr.mxu0 0.0
    %600 = vmatpush1.msra.mxu0 0.0
    %601 = vmatprep.subr.mxu0 0.0
    %602 = vmatpush1.msra.mxu0 0.0
    %603 = vmatprep.subr.mxu0 0.0
    %604 = vmatpush1.msra.mxu0 0.0
    %605 = vmatprep.subr.mxu0 0.0
    %606 = vmatpush1.msra.mxu0 0.0
    %607 = vmatprep.subr.mxu0 0.0
    %608 = vmatpush1.msra.mxu0 0.0
    %609 = vmatprep.subr.mxu0 0.0
    %610 = vmatpush1.msra.mxu0 0.0
    %611 = vmatprep.subr.mxu0 0.0
    %612 = vmatpush1.msra.mxu0 0.0
    %613 = vmatprep.subr.mxu0 0.0
    %614 = vmatpush1.msra.mxu0 0.0
    %615 = vmatprep.subr.mxu0 0.0
    %616 = vmatpush1.msra.mxu0 0.0
    %617 = vmatprep.subr.mxu0 0.0
    %618 = vmatpush1.msra.mxu0 0.0
    %619 = vmatprep.subr.mxu0 0.0
    %620 = vmatpush1.msra.mxu0 0.0
    %621 = vmatprep.subr.mxu0 0.0
    %622 = vmatpush1.msra.mxu0 0.0
    %623 = vmatprep.mubr.f32.mxu0 0.0
    %624 = vmatmul.mubr.f32.gmra.mrb[0].mxu0 %v184
    %v625 = vpop.f32.mrb[0].mxu0
    %v626 = vadd.f32 %v484, %v625
    %v627 = vpop.f32.mrb[0].mxu0
    %v628 = vadd.f32 %v486, %v627
    %629 = vdwg.mxu0
    %630 = vmatprep.subr.mxu0 %v292
    %631 = vmatpush1.msra.mxu0 %v291
    %632 = vmatprep.subr.mxu0 %v296
    %633 = vmatpush1.msra.mxu0 %v295
    %634 = vmatprep.subr.mxu0 %v300
    %635 = vmatpush1.msra.mxu0 %v299
    %636 = vmatprep.subr.mxu0 %v304
    %637 = vmatpush1.msra.mxu0 %v303
    %638 = vmatprep.subr.mxu0 %v308
    %639 = vmatpush1.msra.mxu0 %v307
    %640 = vmatprep.subr.mxu0 %v312
    %641 = vmatpush1.msra.mxu0 %v311
    %642 = vmatprep.subr.mxu0 %v316
    %643 = vmatpush1.msra.mxu0 %v315
    %644 = vmatprep.subr.mxu0 %v320
    %645 = vmatpush1.msra.mxu0 %v319
    %646 = vmatprep.subr.mxu0 %v324
    %647 = vmatpush1.msra.mxu0 %v323
    %648 = vmatprep.subr.mxu0 %v328
    %649 = vmatpush1.msra.mxu0 %v327
    %650 = vmatprep.subr.mxu0 %v332
    %651 = vmatpush1.msra.mxu0 %v331
    %652 = vmatprep.subr.mxu0 %v336
    %653 = vmatpush1.msra.mxu0 %v335
    %654 = vmatprep.subr.mxu0 %v340
    %655 = vmatpush1.msra.mxu0 %v339
    %656 = vmatprep.subr.mxu0 %v344
    %657 = vmatpush1.msra.mxu0 %v343
    %658 = vmatprep.subr.mxu0 %v348
    %659 = vmatpush1.msra.mxu0 %v347
    %660 = vmatprep.subr.mxu0 %v352
    %661 = vmatpush1.msra.mxu0 %v351
    %662 = vmatprep.subr.mxu0 0.0
    %663 = vmatpush1.msra.mxu0 0.0
    %664 = vmatprep.subr.mxu0 0.0
    %665 = vmatpush1.msra.mxu0 0.0
    %666 = vmatprep.subr.mxu0 0.0
    %667 = vmatpush1.msra.mxu0 0.0
    %668 = vmatprep.subr.mxu0 0.0
    %669 = vmatpush1.msra.mxu0 0.0
    %670 = vmatprep.subr.mxu0 0.0
    %671 = vmatpush1.msra.mxu0 0.0
    %672 = vmatprep.subr.mxu0 0.0
    %673 = vmatpush1.msra.mxu0 0.0
    %674 = vmatprep.subr.mxu0 0.0
    %675 = vmatpush1.msra.mxu0 0.0
    %676 = vmatprep.subr.mxu0 0.0
    %677 = vmatpush1.msra.mxu0 0.0
    %678 = vmatprep.subr.mxu0 0.0
    %679 = vmatpush1.msra.mxu0 0.0
    %680 = vmatprep.subr.mxu0 0.0
    %681 = vmatpush1.msra.mxu0 0.0
    %682 = vmatprep.subr.mxu0 0.0
    %683 = vmatpush1.msra.mxu0 0.0
    %684 = vmatprep.subr.mxu0 0.0
    %685 = vmatpush1.msra.mxu0 0.0
    %686 = vmatprep.subr.mxu0 0.0
    %687 = vmatpush1.msra.mxu0 0.0
    %688 = vmatprep.subr.mxu0 0.0
    %689 = vmatpush1.msra.mxu0 0.0
    %690 = vmatprep.subr.mxu0 0.0
    %691 = vmatpush1.msra.mxu0 0.0
    %692 = vmatprep.subr.mxu0 0.0
    %693 = vmatpush1.msra.mxu0 0.0
    %694 = vmatprep.mubr.f32.mxu0 0.0
    %695 = vmatmul.mubr.f32.gmra.mrb[0].mxu0 %v184
    %v696 = vpop.f32.mrb[0].mxu0
    %v697 = vadd.f32 %v555, %v696
    %v698 = vpop.f32.mrb[0].mxu0
    %v699 = vadd.f32 %v557, %v698
    %700 = vdwg.mxu0
    %v701 = vld [vmem:[%s4] sm:$0xf]
    %v703 = vlaneseq
    %v704 = vshrl.u32 %v703, 7
    %v705 = vsub.s32 0, %v704
    %v706 = vrot.slane %v701, %v705
    %v707 = vlaneseq
    %v708 = vshrl.u32 %v707, 7
    %v709 = vsub.s32 1, %v708
    %v710 = vrot.slane %v701, %v709
    %v711 = vlaneseq
    %v712 = vshrl.u32 %v711, 7
    %v713 = vsub.s32 2, %v712
    %v714 = vrot.slane %v701, %v713
    %v715 = vlaneseq
    %v716 = vshrl.u32 %v715, 7
    %v717 = vsub.s32 3, %v716
    %v718 = vrot.slane %v701, %v717
    %v723 = vadd.f32 %v626, %v706
    %v724 = vadd.f32 %v628, %v710
    %v725 = vadd.f32 %v697, %v714
    %v726 = vadd.f32 %v699, %v718
    %v727 = vsub.f32 0.0, %v723
    %v728 = vsub.f32 0.0, %v724
    %v729 = vsub.f32 0.0, %v725
    %v730 = vsub.f32 0.0, %v726
    %v731 = vmul.f32 %v727, 1.442695
    %v732 = vpow.pop %v731
    %v733 = vmul.f32 %v728, 1.442695
    %v734 = vpow.pop %v733
    %v735 = vmul.f32 %v729, 1.442695
    %v736 = vpow.pop %v735
    %v737 = vmul.f32 %v730, 1.442695
    %v738 = vpow.pop %v737
    %v739 = vadd.f32 %v732, 1.0
    %v740 = vadd.f32 %v734, 1.0
    %v741 = vadd.f32 %v736, 1.0
    %v742 = vadd.f32 %v738, 1.0
    %v743 = vrcp.pop %v739
    %v744 = vmul.f32 1.0, %v743
    %v745 = vrcp.pop %v740
    %v746 = vmul.f32 1.0, %v745
    %v747 = vrcp.pop %v741
    %v748 = vmul.f32 1.0, %v747
    %v749 = vrcp.pop %v742
    %v750 = vmul.f32 1.0, %v749
    %v751 = vmul.f32 %v723, %v744
    %v752 = vmul.f32 %v724, %v746
    %v753 = vmul.f32 %v725, %v748
    %v754 = vmul.f32 %v726, %v750
    %v755 = vld [vmem:[#allocation7] sm:$0xff]
    %v756 = vld [vmem:[#allocation7 + $0x8] sm:$0xff]
    %v757 = vld [vmem:[#allocation7 + $0x10] sm:$0xff]
    %v758 = vld [vmem:[#allocation7 + $0x18] sm:$0xff]
    %v759 = vld [vmem:[#allocation7 + $0x20] sm:$0xff]
    %v760 = vld [vmem:[#allocation7 + $0x28] sm:$0xff]
    %v761 = vld [vmem:[#allocation7 + $0x30] sm:$0xff]
    %v762 = vld [vmem:[#allocation7 + $0x38] sm:$0xff]
    %v763 = vld [vmem:[#allocation7 + $0x40] sm:$0xff]
    %v764 = vld [vmem:[#allocation7 + $0x48] sm:$0xff]
    %v765 = vld [vmem:[#allocation7 + $0x50] sm:$0xff]
    %v766 = vld [vmem:[#allocation7 + $0x58] sm:$0xff]
    %v767 = vld [vmem:[#allocation7 + $0x60] sm:$0xff]
    %v768 = vld [vmem:[#allocation7 + $0x68] sm:$0xff]
    %v769 = vld [vmem:[#allocation7 + $0x70] sm:$0xff]
    %v770 = vld [vmem:[#allocation7 + $0x78] sm:$0xff]
    %v771 = vld [vmem:[#allocation7 + $0x80] sm:$0xff]
    %v772 = vld [vmem:[#allocation7 + $0x88] sm:$0xff]
    %v773 = vld [vmem:[#allocation7 + $0x90] sm:$0xff]
    %v774 = vld [vmem:[#allocation7 + $0x98] sm:$0xff]
    %v775 = vld [vmem:[#allocation7 + $0xa0] sm:$0xff]
    %v776 = vld [vmem:[#allocation7 + $0xa8] sm:$0xff]
    %v777 = vld [vmem:[#allocation7 + $0xb0] sm:$0xff]
    %v778 = vld [vmem:[#allocation7 + $0xb8] sm:$0xff]
    %v779 = vld [vmem:[#allocation7 + $0xc0] sm:$0xff]
    %v780 = vld [vmem:[#allocation7 + $0xc8] sm:$0xff]
    %v781 = vld [vmem:[#allocation7 + $0xd0] sm:$0xff]
    %v782 = vld [vmem:[#allocation7 + $0xd8] sm:$0xff]
    %v783 = vld [vmem:[#allocation7 + $0xe0] sm:$0xff]
    %v784 = vld [vmem:[#allocation7 + $0xe8] sm:$0xff]
    %v785 = vld [vmem:[#allocation7 + $0xf0] sm:$0xff]
    %v786 = vld [vmem:[#allocation7 + $0xf8] sm:$0xff]
    %v787 = vld [vmem:[#allocation7 + $0x100] sm:$0xff]
    %v788 = vld [vmem:[#allocation7 + $0x108] sm:$0xff]
    %v789 = vld [vmem:[#allocation7 + $0x110] sm:$0xff]
    %v790 = vld [vmem:[#allocation7 + $0x118] sm:$0xff]
    %v791 = vld [vmem:[#allocation7 + $0x120] sm:$0xff]
    %v792 = vld [vmem:[#allocation7 + $0x128] sm:$0xff]
    %v793 = vld [vmem:[#allocation7 + $0x130] sm:$0xff]
    %v794 = vld [vmem:[#allocation7 + $0x138] sm:$0xff]
    %v795 = vld [vmem:[#allocation7 + $0x140] sm:$0xff]
    %v796 = vld [vmem:[#allocation7 + $0x148] sm:$0xff]
    %v797 = vld [vmem:[#allocation7 + $0x150] sm:$0xff]
    %v798 = vld [vmem:[#allocation7 + $0x158] sm:$0xff]
    %v799 = vld [vmem:[#allocation7 + $0x160] sm:$0xff]
    %v800 = vld [vmem:[#allocation7 + $0x168] sm:$0xff]
    %v801 = vld [vmem:[#allocation7 + $0x170] sm:$0xff]
    %v802 = vld [vmem:[#allocation7 + $0x178] sm:$0xff]
    %v803 = vld [vmem:[#allocation7 + $0x180] sm:$0xff]
    %v804 = vld [vmem:[#allocation7 + $0x188] sm:$0xff]
    %v805 = vld [vmem:[#allocation7 + $0x190] sm:$0xff]
    %v806 = vld [vmem:[#allocation7 + $0x198] sm:$0xff]
    %v807 = vld [vmem:[#allocation7 + $0x1a0] sm:$0xff]
    %v808 = vld [vmem:[#allocation7 + $0x1a8] sm:$0xff]
    %v809 = vld [vmem:[#allocation7 + $0x1b0] sm:$0xff]
    %v810 = vld [vmem:[#allocation7 + $0x1b8] sm:$0xff]
    %v811 = vld [vmem:[#allocation7 + $0x1c0] sm:$0xff]
    %v812 = vld [vmem:[#allocation7 + $0x1c8] sm:$0xff]
    %v813 = vld [vmem:[#allocation7 + $0x1d0] sm:$0xff]
    %v814 = vld [vmem:[#allocation7 + $0x1d8] sm:$0xff]
    %v815 = vld [vmem:[#allocation7 + $0x1e0] sm:$0xff]
    %v816 = vld [vmem:[#allocation7 + $0x1e8] sm:$0xff]
    %v817 = vld [vmem:[#allocation7 + $0x1f0] sm:$0xff]
    %v818 = vld [vmem:[#allocation7 + $0x1f8] sm:$0xff]
    %v819 = vld [vmem:[#allocation7 + $0x200] sm:$0xff]
    %v820 = vld [vmem:[#allocation7 + $0x208] sm:$0xff]
    %v821 = vld [vmem:[#allocation7 + $0x210] sm:$0xff]
    %v822 = vld [vmem:[#allocation7 + $0x218] sm:$0xff]
    %v823 = vld [vmem:[#allocation7 + $0x220] sm:$0xff]
    %v824 = vld [vmem:[#allocation7 + $0x228] sm:$0xff]
    %v825 = vld [vmem:[#allocation7 + $0x230] sm:$0xff]
    %v826 = vld [vmem:[#allocation7 + $0x238] sm:$0xff]
    %v827 = vld [vmem:[#allocation7 + $0x240] sm:$0xff]
    %v828 = vld [vmem:[#allocation7 + $0x248] sm:$0xff]
    %v829 = vld [vmem:[#allocation7 + $0x250] sm:$0xff]
    %v830 = vld [vmem:[#allocation7 + $0x258] sm:$0xff]
    %v831 = vld [vmem:[#allocation7 + $0x260] sm:$0xff]
    %v832 = vld [vmem:[#allocation7 + $0x268] sm:$0xff]
    %v833 = vld [vmem:[#allocation7 + $0x270] sm:$0xff]
    %v834 = vld [vmem:[#allocation7 + $0x278] sm:$0xff]
    %v835 = vld [vmem:[#allocation7 + $0x280] sm:$0xff]
    %v836 = vld [vmem:[#allocation7 + $0x288] sm:$0xff]
    %v837 = vld [vmem:[#allocation7 + $0x290] sm:$0xff]
    %v838 = vld [vmem:[#allocation7 + $0x298] sm:$0xff]
    %v839 = vld [vmem:[#allocation7 + $0x2a0] sm:$0xff]
    %v840 = vld [vmem:[#allocation7 + $0x2a8] sm:$0xff]
    %v841 = vld [vmem:[#allocation7 + $0x2b0] sm:$0xff]
    %v842 = vld [vmem:[#allocation7 + $0x2b8] sm:$0xff]
    %v843 = vld [vmem:[#allocation7 + $0x2c0] sm:$0xff]
    %v844 = vld [vmem:[#allocation7 + $0x2c8] sm:$0xff]
    %v845 = vld [vmem:[#allocation7 + $0x2d0] sm:$0xff]
    %v846 = vld [vmem:[#allocation7 + $0x2d8] sm:$0xff]
    %v847 = vld [vmem:[#allocation7 + $0x2e0] sm:$0xff]
    %v848 = vld [vmem:[#allocation7 + $0x2e8] sm:$0xff]
    %v849 = vld [vmem:[#allocation7 + $0x2f0] sm:$0xff]
    %v850 = vld [vmem:[#allocation7 + $0x2f8] sm:$0xff]
    %v851 = vld [vmem:[#allocation7 + $0x300] sm:$0xff]
    %v852 = vld [vmem:[#allocation7 + $0x308] sm:$0xff]
    %v853 = vld [vmem:[#allocation7 + $0x310] sm:$0xff]
    %v854 = vld [vmem:[#allocation7 + $0x318] sm:$0xff]
    %v855 = vld [vmem:[#allocation7 + $0x320] sm:$0xff]
    %v856 = vld [vmem:[#allocation7 + $0x328] sm:$0xff]
    %v857 = vld [vmem:[#allocation7 + $0x330] sm:$0xff]
    %v858 = vld [vmem:[#allocation7 + $0x338] sm:$0xff]
    %v859 = vld [vmem:[#allocation7 + $0x340] sm:$0xff]
    %v860 = vld [vmem:[#allocation7 + $0x348] sm:$0xff]
    %v861 = vld [vmem:[#allocation7 + $0x350] sm:$0xff]
    %v862 = vld [vmem:[#allocation7 + $0x358] sm:$0xff]
    %v863 = vld [vmem:[#allocation7 + $0x360] sm:$0xff]
    %v864 = vld [vmem:[#allocation7 + $0x368] sm:$0xff]
    %v865 = vld [vmem:[#allocation7 + $0x370] sm:$0xff]
    %v866 = vld [vmem:[#allocation7 + $0x378] sm:$0xff]
    %v867 = vld [vmem:[#allocation7 + $0x380] sm:$0xff]
    %v868 = vld [vmem:[#allocation7 + $0x388] sm:$0xff]
    %v869 = vld [vmem:[#allocation7 + $0x390] sm:$0xff]
    %v870 = vld [vmem:[#allocation7 + $0x398] sm:$0xff]
    %v871 = vld [vmem:[#allocation7 + $0x3a0] sm:$0xff]
    %v872 = vld [vmem:[#allocation7 + $0x3a8] sm:$0xff]
    %v873 = vld [vmem:[#allocation7 + $0x3b0] sm:$0xff]
    %v874 = vld [vmem:[#allocation7 + $0x3b8] sm:$0xff]
    %v875 = vld [vmem:[#allocation7 + $0x3c0] sm:$0xff]
    %v876 = vld [vmem:[#allocation7 + $0x3c8] sm:$0xff]
    %v877 = vld [vmem:[#allocation7 + $0x3d0] sm:$0xff]
    %v878 = vld [vmem:[#allocation7 + $0x3d8] sm:$0xff]
    %v879 = vld [vmem:[#allocation7 + $0x3e0] sm:$0xff]
    %v880 = vld [vmem:[#allocation7 + $0x3e8] sm:$0xff]
    %v881 = vld [vmem:[#allocation7 + $0x3f0] sm:$0xff]
    %v882 = vld [vmem:[#allocation7 + $0x3f8] sm:$0xff]
    %v883 = vld [vmem:[#allocation7 + $0x400] sm:$0xff]
    %v884 = vld [vmem:[#allocation7 + $0x408] sm:$0xff]
    %v885 = vld [vmem:[#allocation7 + $0x410] sm:$0xff]
    %v886 = vld [vmem:[#allocation7 + $0x418] sm:$0xff]
    %v887 = vld [vmem:[#allocation7 + $0x420] sm:$0xff]
    %v888 = vld [vmem:[#allocation7 + $0x428] sm:$0xff]
    %v889 = vld [vmem:[#allocation7 + $0x430] sm:$0xff]
    %v890 = vld [vmem:[#allocation7 + $0x438] sm:$0xff]
    %v891 = vld [vmem:[#allocation7 + $0x440] sm:$0xff]
    %v892 = vld [vmem:[#allocation7 + $0x448] sm:$0xff]
    %v893 = vld [vmem:[#allocation7 + $0x450] sm:$0xff]
    %v894 = vld [vmem:[#allocation7 + $0x458] sm:$0xff]
    %v895 = vld [vmem:[#allocation7 + $0x460] sm:$0xff]
    %v896 = vld [vmem:[#allocation7 + $0x468] sm:$0xff]
    %v897 = vld [vmem:[#allocation7 + $0x470] sm:$0xff]
    %v898 = vld [vmem:[#allocation7 + $0x478] sm:$0xff]
    %v899 = vld [vmem:[#allocation7 + $0x480] sm:$0xff]
    %v900 = vld [vmem:[#allocation7 + $0x488] sm:$0xff]
    %v901 = vld [vmem:[#allocation7 + $0x490] sm:$0xff]
    %v902 = vld [vmem:[#allocation7 + $0x498] sm:$0xff]
    %v903 = vld [vmem:[#allocation7 + $0x4a0] sm:$0xff]
    %v904 = vld [vmem:[#allocation7 + $0x4a8] sm:$0xff]
    %v905 = vld [vmem:[#allocation7 + $0x4b0] sm:$0xff]
    %v906 = vld [vmem:[#allocation7 + $0x4b8] sm:$0xff]
    %v907 = vld [vmem:[#allocation7 + $0x4c0] sm:$0xff]
    %v908 = vld [vmem:[#allocation7 + $0x4c8] sm:$0xff]
    %v909 = vld [vmem:[#allocation7 + $0x4d0] sm:$0xff]
    %v910 = vld [vmem:[#allocation7 + $0x4d8] sm:$0xff]
    %v911 = vld [vmem:[#allocation7 + $0x4e0] sm:$0xff]
    %v912 = vld [vmem:[#allocation7 + $0x4e8] sm:$0xff]
    %v913 = vld [vmem:[#allocation7 + $0x4f0] sm:$0xff]
    %v914 = vld [vmem:[#allocation7 + $0x4f8] sm:$0xff]
    %v915 = vld [vmem:[#allocation7 + $0x500] sm:$0xff]
    %v916 = vld [vmem:[#allocation7 + $0x508] sm:$0xff]
    %v917 = vld [vmem:[#allocation7 + $0x510] sm:$0xff]
    %v918 = vld [vmem:[#allocation7 + $0x518] sm:$0xff]
    %v919 = vld [vmem:[#allocation7 + $0x520] sm:$0xff]
    %v920 = vld [vmem:[#allocation7 + $0x528] sm:$0xff]
    %v921 = vld [vmem:[#allocation7 + $0x530] sm:$0xff]
    %v922 = vld [vmem:[#allocation7 + $0x538] sm:$0xff]
    %v923 = vld [vmem:[#allocation7 + $0x540] sm:$0xff]
    %v924 = vld [vmem:[#allocation7 + $0x548] sm:$0xff]
    %v925 = vld [vmem:[#allocation7 + $0x550] sm:$0xff]
    %v926 = vld [vmem:[#allocation7 + $0x558] sm:$0xff]
    %v927 = vld [vmem:[#allocation7 + $0x560] sm:$0xff]
    %v928 = vld [vmem:[#allocation7 + $0x568] sm:$0xff]
    %v929 = vld [vmem:[#allocation7 + $0x570] sm:$0xff]
    %v930 = vld [vmem:[#allocation7 + $0x578] sm:$0xff]
    %v931 = vld [vmem:[#allocation7 + $0x580] sm:$0xff]
    %v932 = vld [vmem:[#allocation7 + $0x588] sm:$0xff]
    %v933 = vld [vmem:[#allocation7 + $0x590] sm:$0xff]
    %v934 = vld [vmem:[#allocation7 + $0x598] sm:$0xff]
    %v935 = vld [vmem:[#allocation7 + $0x5a0] sm:$0xff]
    %v936 = vld [vmem:[#allocation7 + $0x5a8] sm:$0xff]
    %v937 = vld [vmem:[#allocation7 + $0x5b0] sm:$0xff]
    %v938 = vld [vmem:[#allocation7 + $0x5b8] sm:$0xff]
    %v939 = vld [vmem:[#allocation7 + $0x5c0] sm:$0xff]
    %v940 = vld [vmem:[#allocation7 + $0x5c8] sm:$0xff]
    %v941 = vld [vmem:[#allocation7 + $0x5d0] sm:$0xff]
    %v942 = vld [vmem:[#allocation7 + $0x5d8] sm:$0xff]
    %v943 = vld [vmem:[#allocation7 + $0x5e0] sm:$0xff]
    %v944 = vld [vmem:[#allocation7 + $0x5e8] sm:$0xff]
    %v945 = vld [vmem:[#allocation7 + $0x5f0] sm:$0xff]
    %v946 = vld [vmem:[#allocation7 + $0x5f8] sm:$0xff]
    %v947 = vld [vmem:[#allocation7 + $0x600] sm:$0xff]
    %v948 = vld [vmem:[#allocation7 + $0x608] sm:$0xff]
    %v949 = vld [vmem:[#allocation7 + $0x610] sm:$0xff]
    %v950 = vld [vmem:[#allocation7 + $0x618] sm:$0xff]
    %v951 = vld [vmem:[#allocation7 + $0x620] sm:$0xff]
    %v952 = vld [vmem:[#allocation7 + $0x628] sm:$0xff]
    %v953 = vld [vmem:[#allocation7 + $0x630] sm:$0xff]
    %v954 = vld [vmem:[#allocation7 + $0x638] sm:$0xff]
    %v955 = vld [vmem:[#allocation7 + $0x640] sm:$0xff]
    %v956 = vld [vmem:[#allocation7 + $0x648] sm:$0xff]
    %v957 = vld [vmem:[#allocation7 + $0x650] sm:$0xff]
    %v958 = vld [vmem:[#allocation7 + $0x658] sm:$0xff]
    %v959 = vld [vmem:[#allocation7 + $0x660] sm:$0xff]
    %v960 = vld [vmem:[#allocation7 + $0x668] sm:$0xff]
    %v961 = vld [vmem:[#allocation7 + $0x670] sm:$0xff]
    %v962 = vld [vmem:[#allocation7 + $0x678] sm:$0xff]
    %v963 = vld [vmem:[#allocation7 + $0x680] sm:$0xff]
    %v964 = vld [vmem:[#allocation7 + $0x688] sm:$0xff]
    %v965 = vld [vmem:[#allocation7 + $0x690] sm:$0xff]
    %v966 = vld [vmem:[#allocation7 + $0x698] sm:$0xff]
    %v967 = vld [vmem:[#allocation7 + $0x6a0] sm:$0xff]
    %v968 = vld [vmem:[#allocation7 + $0x6a8] sm:$0xff]
    %v969 = vld [vmem:[#allocation7 + $0x6b0] sm:$0xff]
    %v970 = vld [vmem:[#allocation7 + $0x6b8] sm:$0xff]
    %v971 = vld [vmem:[#allocation7 + $0x6c0] sm:$0xff]
    %v972 = vld [vmem:[#allocation7 + $0x6c8] sm:$0xff]
    %v973 = vld [vmem:[#allocation7 + $0x6d0] sm:$0xff]
    %v974 = vld [vmem:[#allocation7 + $0x6d8] sm:$0xff]
    %v975 = vld [vmem:[#allocation7 + $0x6e0] sm:$0xff]
    %v976 = vld [vmem:[#allocation7 + $0x6e8] sm:$0xff]
    %v977 = vld [vmem:[#allocation7 + $0x6f0] sm:$0xff]
    %v978 = vld [vmem:[#allocation7 + $0x6f8] sm:$0xff]
    %v979 = vld [vmem:[#allocation7 + $0x700] sm:$0xff]
    %v980 = vld [vmem:[#allocation7 + $0x708] sm:$0xff]
    %v981 = vld [vmem:[#allocation7 + $0x710] sm:$0xff]
    %v982 = vld [vmem:[#allocation7 + $0x718] sm:$0xff]
    %v983 = vld [vmem:[#allocation7 + $0x720] sm:$0xff]
    %v984 = vld [vmem:[#allocation7 + $0x728] sm:$0xff]
    %v985 = vld [vmem:[#allocation7 + $0x730] sm:$0xff]
    %v986 = vld [vmem:[#allocation7 + $0x738] sm:$0xff]
    %v987 = vld [vmem:[#allocation7 + $0x740] sm:$0xff]
    %v988 = vld [vmem:[#allocation7 + $0x748] sm:$0xff]
    %v989 = vld [vmem:[#allocation7 + $0x750] sm:$0xff]
    %v990 = vld [vmem:[#allocation7 + $0x758] sm:$0xff]
    %v991 = vld [vmem:[#allocation7 + $0x760] sm:$0xff]
    %v992 = vld [vmem:[#allocation7 + $0x768] sm:$0xff]
    %v993 = vld [vmem:[#allocation7 + $0x770] sm:$0xff]
    %v994 = vld [vmem:[#allocation7 + $0x778] sm:$0xff]
    %v995 = vld [vmem:[#allocation7 + $0x780] sm:$0xff]
    %v996 = vld [vmem:[#allocation7 + $0x788] sm:$0xff]
    %v997 = vld [vmem:[#allocation7 + $0x790] sm:$0xff]
    %v998 = vld [vmem:[#allocation7 + $0x798] sm:$0xff]
    %v999 = vld [vmem:[#allocation7 + $0x7a0] sm:$0xff]
    %v1000 = vld [vmem:[#allocation7 + $0x7a8] sm:$0xff]
    %v1001 = vld [vmem:[#allocation7 + $0x7b0] sm:$0xff]
    %v1002 = vld [vmem:[#allocation7 + $0x7b8] sm:$0xff]
    %v1003 = vld [vmem:[#allocation7 + $0x7c0] sm:$0xff]
    %v1004 = vld [vmem:[#allocation7 + $0x7c8] sm:$0xff]
    %v1005 = vld [vmem:[#allocation7 + $0x7d0] sm:$0xff]
    %v1006 = vld [vmem:[#allocation7 + $0x7d8] sm:$0xff]
    %v1007 = vld [vmem:[#allocation7 + $0x7e0] sm:$0xff]
    %v1008 = vld [vmem:[#allocation7 + $0x7e8] sm:$0xff]
    %v1009 = vld [vmem:[#allocation7 + $0x7f0] sm:$0xff]
    %v1010 = vld [vmem:[#allocation7 + $0x7f8] sm:$0xff]
    %v1011 = vld [vmem:[%s6] sm:$0xf]
    %v1013 = vlaneseq
    %v1014 = vshrl.u32 %v1013, 7
    %v1015 = vsub.s32 0, %v1014
    %v1016 = vrot.slane %v1011, %v1015
    %v1017 = vlaneseq
    %v1018 = vshrl.u32 %v1017, 7
    %v1019 = vsub.s32 1, %v1018
    %v1020 = vrot.slane %v1011, %v1019
    %v1021 = vlaneseq
    %v1022 = vshrl.u32 %v1021, 7
    %v1023 = vsub.s32 2, %v1022
    %v1024 = vrot.slane %v1011, %v1023
    %v1025 = vlaneseq
    %v1026 = vshrl.u32 %v1025, 7
    %v1027 = vsub.s32 3, %v1026
    %v1028 = vrot.slane %v1011, %v1027
    %1033 = vmatprep.subr.mxu0 %v756
    %1034 = vmatpush1.msra.mxu0 %v755
    %1035 = vmatprep.subr.mxu0 %v760
    %1036 = vmatpush1.msra.mxu0 %v759
    %1037 = vmatprep.subr.mxu0 %v764
    %1038 = vmatpush1.msra.mxu0 %v763
    %1039 = vmatprep.subr.mxu0 %v768
    %1040 = vmatpush1.msra.mxu0 %v767
    %1041 = vmatprep.subr.mxu0 %v772
    %1042 = vmatpush1.msra.mxu0 %v771
    %1043 = vmatprep.subr.mxu0 %v776
    %1044 = vmatpush1.msra.mxu0 %v775
    %1045 = vmatprep.subr.mxu0 %v780
    %1046 = vmatpush1.msra.mxu0 %v779
    %1047 = vmatprep.subr.mxu0 %v784
    %1048 = vmatpush1.msra.mxu0 %v783
    %1049 = vmatprep.subr.mxu0 %v788
    %1050 = vmatpush1.msra.mxu0 %v787
    %1051 = vmatprep.subr.mxu0 %v792
    %1052 = vmatpush1.msra.mxu0 %v791
    %1053 = vmatprep.subr.mxu0 %v796
    %1054 = vmatpush1.msra.mxu0 %v795
    %1055 = vmatprep.subr.mxu0 %v800
    %1056 = vmatpush1.msra.mxu0 %v799
    %1057 = vmatprep.subr.mxu0 %v804
    %1058 = vmatpush1.msra.mxu0 %v803
    %1059 = vmatprep.subr.mxu0 %v808
    %1060 = vmatpush1.msra.mxu0 %v807
    %1061 = vmatprep.subr.mxu0 %v812
    %1062 = vmatpush1.msra.mxu0 %v811
    %1063 = vmatprep.subr.mxu0 %v816
    %1064 = vmatpush1.msra.mxu0 %v815
    %1065 = vmatprep.subr.mxu0 %v820
    %1066 = vmatpush1.msra.mxu0 %v819
    %1067 = vmatprep.subr.mxu0 %v824
    %1068 = vmatpush1.msra.mxu0 %v823
    %1069 = vmatprep.subr.mxu0 %v828
    %1070 = vmatpush1.msra.mxu0 %v827
    %1071 = vmatprep.subr.mxu0 %v832
    %1072 = vmatpush1.msra.mxu0 %v831
    %1073 = vmatprep.subr.mxu0 %v836
    %1074 = vmatpush1.msra.mxu0 %v835
    %1075 = vmatprep.subr.mxu0 %v840
    %1076 = vmatpush1.msra.mxu0 %v839
    %1077 = vmatprep.subr.mxu0 %v844
    %1078 = vmatpush1.msra.mxu0 %v843
    %1079 = vmatprep.subr.mxu0 %v848
    %1080 = vmatpush1.msra.mxu0 %v847
    %1081 = vmatprep.subr.mxu0 %v852
    %1082 = vmatpush1.msra.mxu0 %v851
    %1083 = vmatprep.subr.mxu0 %v856
    %1084 = vmatpush1.msra.mxu0 %v855
    %1085 = vmatprep.subr.mxu0 %v860
    %1086 = vmatpush1.msra.mxu0 %v859
    %1087 = vmatprep.subr.mxu0 %v864
    %1088 = vmatpush1.msra.mxu0 %v863
    %1089 = vmatprep.subr.mxu0 %v868
    %1090 = vmatpush1.msra.mxu0 %v867
    %1091 = vmatprep.subr.mxu0 %v872
    %1092 = vmatpush1.msra.mxu0 %v871
    %1093 = vmatprep.subr.mxu0 %v876
    %1094 = vmatpush1.msra.mxu0 %v875
    %1095 = vmatprep.subr.mxu0 %v880
    %1096 = vmatpush1.msra.mxu0 %v879
    %1097 = vmatprep.mubr.f32.mxu0 %v752
    %1098 = vmatmul.mubr.f32.gmra.mrb[0].mxu0 %v751
    %v1099 = vpop.f32.mrb[0].mxu0
    %v1100 = vadd.f32 %v1016, %v1099
    %v1101 = vpop.f32.mrb[0].mxu0
    %v1102 = vadd.f32 %v1020, %v1101
    %1103 = vdwg.mxu0
    %1104 = vmatprep.subr.mxu0 %v884
    %1105 = vmatpush1.msra.mxu0 %v883
    %1106 = vmatprep.subr.mxu0 %v888
    %1107 = vmatpush1.msra.mxu0 %v887
    %1108 = vmatprep.subr.mxu0 %v892
    %1109 = vmatpush1.msra.mxu0 %v891
    %1110 = vmatprep.subr.mxu0 %v896
    %1111 = vmatpush1.msra.mxu0 %v895
    %1112 = vmatprep.subr.mxu0 %v900
    %1113 = vmatpush1.msra.mxu0 %v899
    %1114 = vmatprep.subr.mxu0 %v904
    %1115 = vmatpush1.msra.mxu0 %v903
    %1116 = vmatprep.subr.mxu0 %v908
    %1117 = vmatpush1.msra.mxu0 %v907
    %1118 = vmatprep.subr.mxu0 %v912
    %1119 = vmatpush1.msra.mxu0 %v911
    %1120 = vmatprep.subr.mxu0 %v916
    %1121 = vmatpush1.msra.mxu0 %v915
    %1122 = vmatprep.subr.mxu0 %v920
    %1123 = vmatpush1.msra.mxu0 %v919
    %1124 = vmatprep.subr.mxu0 %v924
    %1125 = vmatpush1.msra.mxu0 %v923
    %1126 = vmatprep.subr.mxu0 %v928
    %1127 = vmatpush1.msra.mxu0 %v927
    %1128 = vmatprep.subr.mxu0 %v932
    %1129 = vmatpush1.msra.mxu0 %v931
    %1130 = vmatprep.subr.mxu0 %v936
    %1131 = vmatpush1.msra.mxu0 %v935
    %1132 = vmatprep.subr.mxu0 %v940
    %1133 = vmatpush1.msra.mxu0 %v939
    %1134 = vmatprep.subr.mxu0 %v944
    %1135 = vmatpush1.msra.mxu0 %v943
    %1136 = vmatprep.subr.mxu0 %v948
    %1137 = vmatpush1.msra.mxu0 %v947
    %1138 = vmatprep.subr.mxu0 %v952
    %1139 = vmatpush1.msra.mxu0 %v951
    %1140 = vmatprep.subr.mxu0 %v956
    %1141 = vmatpush1.msra.mxu0 %v955
    %1142 = vmatprep.subr.mxu0 %v960
    %1143 = vmatpush1.msra.mxu0 %v959
    %1144 = vmatprep.subr.mxu0 %v964
    %1145 = vmatpush1.msra.mxu0 %v963
    %1146 = vmatprep.subr.mxu0 %v968
    %1147 = vmatpush1.msra.mxu0 %v967
    %1148 = vmatprep.subr.mxu0 %v972
    %1149 = vmatpush1.msra.mxu0 %v971
    %1150 = vmatprep.subr.mxu0 %v976
    %1151 = vmatpush1.msra.mxu0 %v975
    %1152 = vmatprep.subr.mxu0 %v980
    %1153 = vmatpush1.msra.mxu0 %v979
    %1154 = vmatprep.subr.mxu0 %v984
    %1155 = vmatpush1.msra.mxu0 %v983
    %1156 = vmatprep.subr.mxu0 %v988
    %1157 = vmatpush1.msra.mxu0 %v987
    %1158 = vmatprep.subr.mxu0 %v992
    %1159 = vmatpush1.msra.mxu0 %v991
    %1160 = vmatprep.subr.mxu0 %v996
    %1161 = vmatpush1.msra.mxu0 %v995
    %1162 = vmatprep.subr.mxu0 %v1000
    %1163 = vmatpush1.msra.mxu0 %v999
    %1164 = vmatprep.subr.mxu0 %v1004
    %1165 = vmatpush1.msra.mxu0 %v1003
    %1166 = vmatprep.subr.mxu0 %v1008
    %1167 = vmatpush1.msra.mxu0 %v1007
    %1168 = vmatprep.mubr.f32.mxu0 %v754
    %1169 = vmatmul.mubr.f32.gmra.mrb[0].mxu0 %v753
    %v1170 = vpop.f32.mrb[0].mxu0
    %v1171 = vadd.f32 %v1100, %v1170
    %v1172 = vpop.f32.mrb[0].mxu0
    %v1173 = vadd.f32 %v1102, %v1172
    %1174 = vdwg.mxu0
    %1175 = vmatprep.subr.mxu0 %v758
    %1176 = vmatpush1.msra.mxu0 %v757
    %1177 = vmatprep.subr.mxu0 %v762
    %1178 = vmatpush1.msra.mxu0 %v761
    %1179 = vmatprep.subr.mxu0 %v766
    %1180 = vmatpush1.msra.mxu0 %v765
    %1181 = vmatprep.subr.mxu0 %v770
    %1182 = vmatpush1.msra.mxu0 %v769
    %1183 = vmatprep.subr.mxu0 %v774
    %1184 = vmatpush1.msra.mxu0 %v773
    %1185 = vmatprep.subr.mxu0 %v778
    %1186 = vmatpush1.msra.mxu0 %v777
    %1187 = vmatprep.subr.mxu0 %v782
    %1188 = vmatpush1.msra.mxu0 %v781
    %1189 = vmatprep.subr.mxu0 %v786
    %1190 = vmatpush1.msra.mxu0 %v785
    %1191 = vmatprep.subr.mxu0 %v790
    %1192 = vmatpush1.msra.mxu0 %v789
    %1193 = vmatprep.subr.mxu0 %v794
    %1194 = vmatpush1.msra.mxu0 %v793
    %1195 = vmatprep.subr.mxu0 %v798
    %1196 = vmatpush1.msra.mxu0 %v797
    %1197 = vmatprep.subr.mxu0 %v802
    %1198 = vmatpush1.msra.mxu0 %v801
    %1199 = vmatprep.subr.mxu0 %v806
    %1200 = vmatpush1.msra.mxu0 %v805
    %1201 = vmatprep.subr.mxu0 %v810
    %1202 = vmatpush1.msra.mxu0 %v809
    %1203 = vmatprep.subr.mxu0 %v814
    %1204 = vmatpush1.msra.mxu0 %v813
    %1205 = vmatprep.subr.mxu0 %v818
    %1206 = vmatpush1.msra.mxu0 %v817
    %1207 = vmatprep.subr.mxu0 %v822
    %1208 = vmatpush1.msra.mxu0 %v821
    %1209 = vmatprep.subr.mxu0 %v826
    %1210 = vmatpush1.msra.mxu0 %v825
    %1211 = vmatprep.subr.mxu0 %v830
    %1212 = vmatpush1.msra.mxu0 %v829
    %1213 = vmatprep.subr.mxu0 %v834
    %1214 = vmatpush1.msra.mxu0 %v833
    %1215 = vmatprep.subr.mxu0 %v838
    %1216 = vmatpush1.msra.mxu0 %v837
    %1217 = vmatprep.subr.mxu0 %v842
    %1218 = vmatpush1.msra.mxu0 %v841
    %1219 = vmatprep.subr.mxu0 %v846
    %1220 = vmatpush1.msra.mxu0 %v845
    %1221 = vmatprep.subr.mxu0 %v850
    %1222 = vmatpush1.msra.mxu0 %v849
    %1223 = vmatprep.subr.mxu0 %v854
    %1224 = vmatpush1.msra.mxu0 %v853
    %1225 = vmatprep.subr.mxu0 %v858
    %1226 = vmatpush1.msra.mxu0 %v857
    %1227 = vmatprep.subr.mxu0 %v862
    %1228 = vmatpush1.msra.mxu0 %v861
    %1229 = vmatprep.subr.mxu0 %v866
    %1230 = vmatpush1.msra.mxu0 %v865
    %1231 = vmatprep.subr.mxu0 %v870
    %1232 = vmatpush1.msra.mxu0 %v869
    %1233 = vmatprep.subr.mxu0 %v874
    %1234 = vmatpush1.msra.mxu0 %v873
    %1235 = vmatprep.subr.mxu0 %v878
    %1236 = vmatpush1.msra.mxu0 %v877
    %1237 = vmatprep.subr.mxu0 %v882
    %1238 = vmatpush1.msra.mxu0 %v881
    %1239 = vmatprep.mubr.f32.mxu0 %v752
    %1240 = vmatmul.mubr.f32.gmra.mrb[0].mxu0 %v751
    %v1241 = vpop.f32.mrb[0].mxu0
    %v1242 = vadd.f32 %v1024, %v1241
    %v1243 = vpop.f32.mrb[0].mxu0
    %v1244 = vadd.f32 %v1028, %v1243
    %1245 = vdwg.mxu0
    %1246 = vmatprep.subr.mxu0 %v886
    %1247 = vmatpush1.msra.mxu0 %v885
    %1248 = vmatprep.subr.mxu0 %v890
    %1249 = vmatpush1.msra.mxu0 %v889
    %1250 = vmatprep.subr.mxu0 %v894
    %1251 = vmatpush1.msra.mxu0 %v893
    %1252 = vmatprep.subr.mxu0 %v898
    %1253 = vmatpush1.msra.mxu0 %v897
    %1254 = vmatprep.subr.mxu0 %v902
    %1255 = vmatpush1.msra.mxu0 %v901
    %1256 = vmatprep.subr.mxu0 %v906
    %1257 = vmatpush1.msra.mxu0 %v905
    %1258 = vmatprep.subr.mxu0 %v910
    %1259 = vmatpush1.msra.mxu0 %v909
    %1260 = vmatprep.subr.mxu0 %v914
    %1261 = vmatpush1.msra.mxu0 %v913
    %1262 = vmatprep.subr.mxu0 %v918
    %1263 = vmatpush1.msra.mxu0 %v917
    %1264 = vmatprep.subr.mxu0 %v922
    %1265 = vmatpush1.msra.mxu0 %v921
    %1266 = vmatprep.subr.mxu0 %v926
    %1267 = vmatpush1.msra.mxu0 %v925
    %1268 = vmatprep.subr.mxu0 %v930
    %1269 = vmatpush1.msra.mxu0 %v929
    %1270 = vmatprep.subr.mxu0 %v934
    %1271 = vmatpush1.msra.mxu0 %v933
    %1272 = vmatprep.subr.mxu0 %v938
    %1273 = vmatpush1.msra.mxu0 %v937
    %1274 = vmatprep.subr.mxu0 %v942
    %1275 = vmatpush1.msra.mxu0 %v941
    %1276 = vmatprep.subr.mxu0 %v946
    %1277 = vmatpush1.msra.mxu0 %v945
    %1278 = vmatprep.subr.mxu0 %v950
    %1279 = vmatpush1.msra.mxu0 %v949
    %1280 = vmatprep.subr.mxu0 %v954
    %1281 = vmatpush1.msra.mxu0 %v953
    %1282 = vmatprep.subr.mxu0 %v958
    %1283 = vmatpush1.msra.mxu0 %v957
    %1284 = vmatprep.subr.mxu0 %v962
    %1285 = vmatpush1.msra.mxu0 %v961
    %1286 = vmatprep.subr.mxu0 %v966
    %1287 = vmatpush1.msra.mxu0 %v965
    %1288 = vmatprep.subr.mxu0 %v970
    %1289 = vmatpush1.msra.mxu0 %v969
    %1290 = vmatprep.subr.mxu0 %v974
    %1291 = vmatpush1.msra.mxu0 %v973
    %1292 = vmatprep.subr.mxu0 %v978
    %1293 = vmatpush1.msra.mxu0 %v977
    %1294 = vmatprep.subr.mxu0 %v982
    %1295 = vmatpush1.msra.mxu0 %v981
    %1296 = vmatprep.subr.mxu0 %v986
    %1297 = vmatpush1.msra.mxu0 %v985
    %1298 = vmatprep.subr.mxu0 %v990
    %1299 = vmatpush1.msra.mxu0 %v989
    %1300 = vmatprep.subr.mxu0 %v994
    %1301 = vmatpush1.msra.mxu0 %v993
    %1302 = vmatprep.subr.mxu0 %v998
    %1303 = vmatpush1.msra.mxu0 %v997
    %1304 = vmatprep.subr.mxu0 %v1002
    %1305 = vmatpush1.msra.mxu0 %v1001
    %1306 = vmatprep.subr.mxu0 %v1006
    %1307 = vmatpush1.msra.mxu0 %v1005
    %1308 = vmatprep.subr.mxu0 %v1010
    %1309 = vmatpush1.msra.mxu0 %v1009
    %1310 = vmatprep.mubr.f32.mxu0 %v754
    %1311 = vmatmul.mubr.f32.gmra.mrb[0].mxu0 %v753
    %v1312 = vpop.f32.mrb[0].mxu0
    %v1313 = vadd.f32 %v1242, %v1312
    %v1314 = vpop.f32.mrb[0].mxu0
    %v1315 = vadd.f32 %v1244, %v1314
    %1316 = vdwg.mxu0
    %1317 = vst [vmem:[#allocation8] sm:$0xff] %v1171
    %1318 = vst [vmem:[#allocation8 + $0x8] sm:$0xff] %v1173
    %1319 = vst [vmem:[#allocation8 + $0x10] sm:$0xff] %v1313
    %1320 = vst [vmem:[#allocation8 + $0x18] sm:$0xff] %v1315
    // Predicated region
    $region42: #{tpu_custom_call.1} parent=1 // pred_check
      _
    $region43: #{tpu_custom_call.1} parent=1 // pred_check_branch
      %1322 = sbr.rel (0) target = $region45
    $region44: #{tpu_custom_call.1} parent=1 // pred_region
      %s1324 = ssub.s32 512, 512
      %1325 = vsyncadd [#allocation4], %s1324
      %s1327 = sshll.u32 [#allocation8], 4
      %s1328 = int_to_ptr.vmem [resolvable:$true] %s1327
      %1330 = dma.vmem_to_hbm [thread:$0]  %s1328, 512, %s7, [#allocation4]
    $region45: #{tpu_custom_call.1} parent=1 // pred_fallthru
      _
    // Predicated region
    $region46: #{tpu_custom_call.1} parent=1 // pred_check
      _
    $region47: #{tpu_custom_call.1} parent=1 // pred_check_branch
      %1332 = sbr.rel (0) target = $region49
    $region48: #{tpu_custom_call.1} parent=1 // pred_region
      %1333 = dma.done [#allocation4], 512
    $region49: #{tpu_custom_call.1} parent=1 // pred_fallthru
      _
    %1334 = vsyncpa [#allocation3], 1
    %1335 = vsyncpa [#allocation6], 1
    %1336 = vsyncpa [#allocation4], 1

</llo_original>
